<compile_context>
chip_gen: v7x
topology: tpu7x:2x2x1
jax: 0.10.0
libtpu: 0.0.40
codegen_flags: <defaults>
</compile_context>

<pallas_src>
import functools

import numpy as np
import jax
import jax.numpy as jnp
from jax.experimental import pallas as pl
from jax.experimental.pallas import tpu as pltpu


# Coarse CDF: 16 boundaries spaced 2**26 apart cover every bit pattern of a
# pred in [0, 1] (patterns <= 0x3F800000 < 16 << 26).  The sentinel pred
# (e = exp(+1.0) for ignored pixels) lies above all boundaries, so the last
# boundary count is exactly n_valid.
_N_BINS = 16
_BIN_SHIFT = 26
_BIN_BOUNDS = tuple(
    float(np.array(((j + 1) << _BIN_SHIFT) - 1, dtype=np.uint32).view(np.float32))
    for j in range(_N_BINS)
)


# ----------------------------------------------------------------------------
# Kernel 1: log p_true (NCHW in, NHW out) + per-tile coarse CDF of pred
# ----------------------------------------------------------------------------
def _ce_hist_kernel(score_ref, target_ref, logp_ref, hist_ref, *, ignore_label):
    t = target_ref[0]                                    # (th, W) int32
    valid = t != ignore_label

    c_count = score_ref.shape[1]
    # running max over channels (leading axis -> pure VPU work, no XLU)
    m = score_ref[0, 0].astype(jnp.float32)
    for c in range(1, c_count):
        m = jnp.maximum(m, score_ref[0, c].astype(jnp.float32))

    # sum(exp) and true-class logit in one channel loop (no iota temporaries)
    sum_e = jnp.zeros_like(m)
    s_true = jnp.zeros_like(m)
    for c in range(c_count):
        s_c = score_ref[0, c].astype(jnp.float32)
        sum_e = sum_e + jnp.exp(s_c - m)
        s_true = s_true + jnp.where(t == c, s_c, 0.0)

    logp = s_true - m - jnp.log(sum_e)                   # log p_true, <= 0
    logp = jnp.where(valid, logp, 1.0)                   # sentinel +1.0 if ignored
    logp_ref[0] = logp

    # coarse CDF of pred while it is VMEM-resident (boundary compares are
    # value-space equivalents of bit-pattern boundaries for non-negative f32)
    pred = jnp.exp(logp)                                  # (0,1] valid, e ignored
    lane = jax.lax.broadcasted_iota(jnp.int32, (1, 1, 8, 128), 3)
    sub = jax.lax.broadcasted_iota(jnp.int32, (1, 1, 8, 128), 2)
    hist = jnp.zeros((1, 1, 8, 128), jnp.float32)
    for j, bound in enumerate(_BIN_BOUNDS):
        cnt = jnp.sum((pred <= bound).astype(jnp.float32))
        hist = jnp.where((lane == j) & (sub == 0), cnt, hist)
    hist_ref[...] = hist


# ----------------------------------------------------------------------------
# Kernel 2: fully-parallel per-tile partial sum / count of kept losses
# ----------------------------------------------------------------------------
def _ohem_partial_kernel(thr_ref, logp_ref, psum_ref, pcnt_ref, *, groups):
    thr = thr_ref[0]
    logp = logp_ref[...]                                  # (1, th2, W)
    valid = logp <= 0.0                                   # sentinel is +1.0
    pred = jnp.exp(logp)                                  # EUP slot, free
    keep = valid & (pred < thr)
    kl = jnp.where(keep, -logp, 0.0)                      # exact CE loss
    kc = keep.astype(jnp.float32)
    if groups > 1:                                        # fold sublane groups -> (8, W)
        _, th2, w = kl.shape
        r = th2 // groups
        kl = jnp.sum(kl.reshape(1, groups, r, w), axis=1)
        kc = jnp.sum(kc.reshape(1, groups, r, w), axis=1)
    psum_ref[...] = kl
    pcnt_ref[...] = kc


# ----------------------------------------------------------------------------
# Tiling / VMEM helpers
# ----------------------------------------------------------------------------
def _vmem_budgets():
    cap = 128 * 1024 * 1024
    try:
        info = pltpu.get_tpu_info()
        cap = int(getattr(info, "vmem_capacity_bytes", cap))
    except Exception:
        pass
    if cap >= 100 * 1024 * 1024:       # v5e / v6e: 128 MiB VMEM, HBM-bound
        return 6 << 20, 64 << 20
    return 3 << 20, 40 << 20            # v7x: 64 MiB VMEM per TensorCore


def _pick_tile(h, n_chan, w, budget_bytes):
    """Largest multiple-of-8 divisor of h whose block fits the budget (no pad)."""
    if h % 8 != 0:
        return h
    bytes_per_row = max(1, n_chan * w * 4)
    max_rows = max(8, (budget_bytes // bytes_per_row) // 8 * 8)
    best = 8
    for t in range(8, min(h, max_rows) + 1, 8):
        if h % t == 0:
            best = t
    return best


def _choose_tiling(n, h, n_chan, w, budget_bytes):
    """Return (padded_H, tile_h); pads H instead of emitting oversized blocks."""
    bytes_per_row = max(1, n_chan * w * 4)
    max_rows = max(8, (budget_bytes // bytes_per_row) // 8 * 8)
    if h % 8 == 0:
        hp, tile = h, _pick_tile(h, n_chan, w, budget_bytes)
    elif h * bytes_per_row <= budget_bytes:
        return h, h                                      # small: one full-H block
    else:
        tile = max_rows
        hp = -(-h // tile) * tile                        # pad (rows become ignored)
    # keep >= 2 grid steps so both v7x TensorCores get work
    if n * (hp // tile) < 2 and tile > 8:
        for t in range(tile - 8, 7, -8):
            if hp % t == 0:
                tile = t
                break
    return hp, tile


# ----------------------------------------------------------------------------
# Wrapper
# ----------------------------------------------------------------------------
def ohem_cross_entropy(score, target, *, ignore_label=-1, thres=0.7,
                       min_kept=100000):
    """score: (N, C, H, W) float; target: (N, H, W) int.  Returns scalar OHEM loss."""
    N, C, H, W = score.shape
    assert target.shape == (N, H, W)
    # TODO(synk): bilinear upsample path (F.upsample) when score spatial != target spatial.
    # TODO(synk): per-class `weight` is not supported (module default weight=None).
    min_kept = max(1, int(min_kept))
    target = target.astype(jnp.int32)

    blk_budget, vmem_limit = _vmem_budgets()
    Hp, tile_h = _choose_tiling(N, H, C, W, blk_budget)
    if Hp != H:
        score = jnp.pad(score, ((0, 0), (0, 0), (0, Hp - H), (0, 0)))
        target = jnp.pad(target, ((0, 0), (0, Hp - H), (0, 0)),
                         constant_values=ignore_label)
    n_t = Hp // tile_h

    # ---- pass 1: per-pixel log p_true + per-tile coarse CDF ---------------------
    logp, hist = pl.pallas_call(
        functools.partial(_ce_hist_kernel, ignore_label=ignore_label),
        out_shape=(
            jax.ShapeDtypeStruct((N, Hp, W), jnp.float32),
            jax.ShapeDtypeStruct((N, n_t, 8, 128), jnp.float32),
        ),
        grid=(N, n_t),
        in_specs=[
            pl.BlockSpec((1, C, tile_h, W), lambda n, h: (n, 0, h, 0)),
            pl.BlockSpec((1, tile_h, W), lambda n, h: (n, h, 0)),
        ],
        out_specs=[
            pl.BlockSpec((1, tile_h, W), lambda n, h: (n, h, 0)),
            pl.BlockSpec((1, 1, 8, 128), lambda n, h: (n, h, 0, 0)),
        ],
        compiler_params=pltpu.CompilerParams(
            dimension_semantics=("parallel", "parallel"),
            vmem_limit_bytes=vmem_limit),
    )(score, target)

    # ---- glue: OHEM threshold = max(k-th smallest valid pred, thres) ------------
    cdf = jnp.sum(hist.astype(jnp.int32), axis=(0, 1, 2))[:_N_BINS]
    n_valid = cdf[_N_BINS - 1]
    k = jnp.maximum(jnp.minimum(jnp.int32(min_kept), n_valid - 1), 0)

    blk = jnp.sum((cdf <= k).astype(jnp.uint32))          # coarse block holding rank k
    base = blk << jnp.uint32(_BIN_SHIFT)
    # upper bound of the k-th value from the coarse CDF alone
    ub = jax.lax.bitcast_convert_type(
        ((blk + jnp.uint32(1)) << jnp.uint32(_BIN_SHIFT)) - jnp.uint32(1),
        jnp.float32)

    def _exact_kth():
        # exact bit-level finish: pred patterns are monotone in value (pred >= 0)
        u = jax.lax.bitcast_convert_type(jnp.exp(logp.reshape(-1)), jnp.uint32)

        def body(i, e):
            bit = jnp.uint32(1) << (jnp.uint32(_BIN_SHIFT) - i.astype(jnp.uint32))
            cand = e | bit
            cnt = jnp.sum((u <= base + cand - jnp.uint32(1)).astype(jnp.int32))
            return jnp.where(cnt <= k, cand, e)

        e = jax.lax.fori_loop(0, _BIN_SHIFT + 1, body, jnp.uint32(0))
        # base + e is exactly the bit pattern of the k-th order statistic.
        return jax.lax.bitcast_convert_type(base + e, jnp.float32)

    # if the coarse CDF already proves kth <= thres, the exact search is moot.
    min_value = jax.lax.cond(ub <= jnp.float32(thres),
                             lambda: jnp.float32(thres),
                             _exact_kth)
    threshold = jnp.maximum(min_value, jnp.float32(thres)).reshape(1)

    # ---- pass 2: per-tile partial sums / counts (both axes parallel) ------------
    tile_h2 = _pick_tile(Hp, 2, W, blk_budget)
    n_t2 = Hp // tile_h2
    rows_out = 8 if tile_h2 % 8 == 0 else tile_h2
    groups = tile_h2 // rows_out
    psum, pcnt = pl.pallas_call(
        functools.partial(_ohem_partial_kernel, groups=groups),
        out_shape=(
            jax.ShapeDtypeStruct((N, n_t2 * rows_out, W), jnp.float32),
            jax.ShapeDtypeStruct((N, n_t2 * rows_out, W), jnp.float32),
        ),
        grid=(N, n_t2),
        in_specs=[
            pl.BlockSpec(memory_space=pltpu.SMEM),
            pl.BlockSpec((1, tile_h2, W), lambda n, h: (n, h, 0)),
        ],
        out_specs=[
            pl.BlockSpec((1, rows_out, W), lambda n, h: (n, h, 0)),
            pl.BlockSpec((1, rows_out, W), lambda n, h: (n, h, 0)),
        ],
        compiler_params=pltpu.CompilerParams(
            dimension_semantics=("parallel", "parallel"),
            vmem_limit_bytes=vmem_limit),
    )(threshold, logp)

    loss_sum = jnp.sum(psum)
    keep_cnt = jnp.sum(pcnt)
    # PyTorch yields NaN on an empty keep set (e.g. all pixels ignored); guard it.
    return jnp.where(keep_cnt > 0, loss_sum / jnp.maximum(keep_cnt, 1.0),
                     jnp.float32(0.0))


# ----------------------------------------------------------------------------
# Pure-JAX reference (mirrors the PyTorch forward)
# ----------------------------------------------------------------------------
def ohem_cross_entropy_ref(score, target, *, ignore_label=-1, thres=0.7, min_kept=100000):
    N, C, H, W = score.shape
    logits = jnp.transpose(score, (0, 2, 3, 1)).reshape(-1, C).astype(jnp.float32)
    t = target.reshape(-1).astype(jnp.int32)
    valid = t != ignore_label
    t_safe = jnp.where(valid, t, 0)
    logp = jax.nn.log_softmax(logits, axis=-1)
    logp_true = jnp.take_along_axis(logp, t_safe[:, None], axis=1)[:, 0]
    loss = jnp.where(valid, -logp_true, 0.0)
    pred = jnp.exp(logp_true)
    n_valid = jnp.sum(valid.astype(jnp.int32))
    sorted_pred = jnp.sort(jnp.where(valid, pred, jnp.inf))
    kth = jnp.minimum(jnp.int32(max(1, min_kept)), n_valid - 1)
    min_value = jnp.take(sorted_pred, kth)
    threshold = jnp.maximum(min_value, jnp.float32(thres))
    keep = valid & (pred < threshold)
    return jnp.sum(jnp.where(keep, loss, 0.0)) / jnp.sum(keep.astype(jnp.float32))


if __name__ == "__main__":
    key = jax.random.PRNGKey(0)
    k1, k2, k3 = jax.random.split(key, 3)

    N, C, H, W = 2, 8, 16, 16
    ignore_label = -1
    thres = 0.7
    min_kept = 100

    score = jax.random.normal(k1, (N, C, H, W), dtype=jnp.float32)
    target = jax.random.randint(k2, (N, H, W), 0, C, dtype=jnp.int32)
    # sprinkle some ignored pixels
    ignore_mask = jax.random.uniform(k3, (N, H, W)) < 0.1
    target = jnp.where(ignore_mask, ignore_label, target)

    out = ohem_cross_entropy(score, target, ignore_label=ignore_label,
                             thres=thres, min_kept=min_kept)
    out = jax.block_until_ready(out)

    ref = jax.block_until_ready(
        ohem_cross_entropy_ref(score, target, ignore_label=ignore_label,
                               thres=thres, min_kept=min_kept))

    assert jnp.allclose(out, ref, rtol=1e-5, atol=1e-5), (out, ref)
    print("KERNEL_OK")
</pallas_src>

<mosaic_0001>
module attributes {stable_mosaic.version = 11 : i64} {
  func.func @_ce_hist_kernel(%arg0: i32, %arg1: i32, %arg2: memref<1x8x16x16xf32, #tpu.memory_space<vmem>>, %arg3: memref<1x16x16xi32, #tpu.memory_space<vmem>>, %arg4: memref<1x16x16xf32, #tpu.memory_space<vmem>>, %arg5: memref<1x1x8x128xf32, #tpu.memory_space<vmem>>) attributes {dimension_semantics = [#tpu.dimension_semantics<parallel>, #tpu.dimension_semantics<parallel>], iteration_bounds = array<i64: 2, 1>, scalar_prefetch = 0 : i64, scratch_operands = 0 : i64, tpu.core_type = #tpu.core_type<tc>, window_params = [{transform_indices = @transform_0, window_bounds = array<i64: 1, 8, 16, 16>}, {transform_indices = @transform_1, window_bounds = array<i64: 1, 16, 16>}, {transform_indices = @transform_2, window_bounds = array<i64: 1, 16, 16>}, {transform_indices = @transform_3, window_bounds = array<i64: 1, 1, 8, 128>}]} {
    %c0 = arith.constant 0 : index
    %c0_0 = arith.constant 0 : index
    %c0_1 = arith.constant 0 : index
    %0 = vector.load %arg3[%c0, %c0_0, %c0_1] : memref<1x16x16xi32, #tpu.memory_space<vmem>>, vector<1x16x16xi32>
    %1 = vector.shape_cast %0 : vector<1x16x16xi32> to vector<16x16xi32>
    %c-1_i32 = arith.constant -1 : i32
    %2 = vector.broadcast %c-1_i32 : i32 to vector<16x16xi32>
    %3 = arith.cmpi ne, %1, %2 : vector<16x16xi32>
    %c0_2 = arith.constant 0 : index
    %c0_3 = arith.constant 0 : index
    %c0_4 = arith.constant 0 : index
    %c0_5 = arith.constant 0 : index
    %4 = vector.load %arg2[%c0_2, %c0_3, %c0_4, %c0_5] : memref<1x8x16x16xf32, #tpu.memory_space<vmem>>, vector<1x1x16x16xf32>
    %5 = vector.shape_cast %4 : vector<1x1x16x16xf32> to vector<16x16xf32>
    %c0_6 = arith.constant 0 : index
    %c1 = arith.constant 1 : index
    %c0_7 = arith.constant 0 : index
    %c0_8 = arith.constant 0 : index
    %6 = vector.load %arg2[%c0_6, %c1, %c0_7, %c0_8] : memref<1x8x16x16xf32, #tpu.memory_space<vmem>>, vector<1x1x16x16xf32>
    %7 = vector.shape_cast %6 : vector<1x1x16x16xf32> to vector<16x16xf32>
    %8 = arith.maximumf %5, %7 : vector<16x16xf32>
    %c0_9 = arith.constant 0 : index
    %c2 = arith.constant 2 : index
    %c0_10 = arith.constant 0 : index
    %c0_11 = arith.constant 0 : index
    %9 = vector.load %arg2[%c0_9, %c2, %c0_10, %c0_11] : memref<1x8x16x16xf32, #tpu.memory_space<vmem>>, vector<1x1x16x16xf32>
    %10 = vector.shape_cast %9 : vector<1x1x16x16xf32> to vector<16x16xf32>
    %11 = arith.maximumf %8, %10 : vector<16x16xf32>
    %c0_12 = arith.constant 0 : index
    %c3 = arith.constant 3 : index
    %c0_13 = arith.constant 0 : index
    %c0_14 = arith.constant 0 : index
    %12 = vector.load %arg2[%c0_12, %c3, %c0_13, %c0_14] : memref<1x8x16x16xf32, #tpu.memory_space<vmem>>, vector<1x1x16x16xf32>
    %13 = vector.shape_cast %12 : vector<1x1x16x16xf32> to vector<16x16xf32>
    %14 = arith.maximumf %11, %13 : vector<16x16xf32>
    %c0_15 = arith.constant 0 : index
    %c4 = arith.constant 4 : index
    %c0_16 = arith.constant 0 : index
    %c0_17 = arith.constant 0 : index
    %15 = vector.load %arg2[%c0_15, %c4, %c0_16, %c0_17] : memref<1x8x16x16xf32, #tpu.memory_space<vmem>>, vector<1x1x16x16xf32>
    %16 = vector.shape_cast %15 : vector<1x1x16x16xf32> to vector<16x16xf32>
    %17 = arith.maximumf %14, %16 : vector<16x16xf32>
    %c0_18 = arith.constant 0 : index
    %c5 = arith.constant 5 : index
    %c0_19 = arith.constant 0 : index
    %c0_20 = arith.constant 0 : index
    %18 = vector.load %arg2[%c0_18, %c5, %c0_19, %c0_20] : memref<1x8x16x16xf32, #tpu.memory_space<vmem>>, vector<1x1x16x16xf32>
    %19 = vector.shape_cast %18 : vector<1x1x16x16xf32> to vector<16x16xf32>
    %20 = arith.maximumf %17, %19 : vector<16x16xf32>
    %c0_21 = arith.constant 0 : index
    %c6 = arith.constant 6 : index
    %c0_22 = arith.constant 0 : index
    %c0_23 = arith.constant 0 : index
    %21 = vector.load %arg2[%c0_21, %c6, %c0_22, %c0_23] : memref<1x8x16x16xf32, #tpu.memory_space<vmem>>, vector<1x1x16x16xf32>
    %22 = vector.shape_cast %21 : vector<1x1x16x16xf32> to vector<16x16xf32>
    %23 = arith.maximumf %20, %22 : vector<16x16xf32>
    %c0_24 = arith.constant 0 : index
    %c7 = arith.constant 7 : index
    %c0_25 = arith.constant 0 : index
    %c0_26 = arith.constant 0 : index
    %24 = vector.load %arg2[%c0_24, %c7, %c0_25, %c0_26] : memref<1x8x16x16xf32, #tpu.memory_space<vmem>>, vector<1x1x16x16xf32>
    %25 = vector.shape_cast %24 : vector<1x1x16x16xf32> to vector<16x16xf32>
    %26 = arith.maximumf %23, %25 : vector<16x16xf32>
    %cst = arith.constant 0.000000e+00 : f32
    %27 = vector.broadcast %cst : f32 to vector<16x16xf32>
    %cst_27 = arith.constant 0.000000e+00 : f32
    %28 = vector.broadcast %cst_27 : f32 to vector<16x16xf32>
    %c0_28 = arith.constant 0 : index
    %c0_29 = arith.constant 0 : index
    %c0_30 = arith.constant 0 : index
    %c0_31 = arith.constant 0 : index
    %29 = vector.load %arg2[%c0_28, %c0_29, %c0_30, %c0_31] : memref<1x8x16x16xf32, #tpu.memory_space<vmem>>, vector<1x1x16x16xf32>
    %30 = vector.shape_cast %29 : vector<1x1x16x16xf32> to vector<16x16xf32>
    %31 = arith.subf %30, %26 : vector<16x16xf32>
    %32 = math.exp %31 : vector<16x16xf32>
    %33 = arith.addf %27, %32 : vector<16x16xf32>
    %c0_i32 = arith.constant 0 : i32
    %34 = vector.broadcast %c0_i32 : i32 to vector<16x16xi32>
    %35 = arith.cmpi eq, %1, %34 : vector<16x16xi32>
    %cst_32 = arith.constant 0.000000e+00 : f32
    %36 = vector.broadcast %cst_32 : f32 to vector<16x16xf32>
    %37 = arith.select %35, %30, %36 : vector<16x16xi1>, vector<16x16xf32>
    %38 = arith.addf %28, %37 : vector<16x16xf32>
    %c0_33 = arith.constant 0 : index
    %c1_34 = arith.constant 1 : index
    %c0_35 = arith.constant 0 : index
    %c0_36 = arith.constant 0 : index
    %39 = vector.load %arg2[%c0_33, %c1_34, %c0_35, %c0_36] : memref<1x8x16x16xf32, #tpu.memory_space<vmem>>, vector<1x1x16x16xf32>
    %40 = vector.shape_cast %39 : vector<1x1x16x16xf32> to vector<16x16xf32>
    %41 = arith.subf %40, %26 : vector<16x16xf32>
    %42 = math.exp %41 : vector<16x16xf32>
    %43 = arith.addf %33, %42 : vector<16x16xf32>
    %c1_i32 = arith.constant 1 : i32
    %44 = vector.broadcast %c1_i32 : i32 to vector<16x16xi32>
    %45 = arith.cmpi eq, %1, %44 : vector<16x16xi32>
    %cst_37 = arith.constant 0.000000e+00 : f32
    %46 = vector.broadcast %cst_37 : f32 to vector<16x16xf32>
    %47 = arith.select %45, %40, %46 : vector<16x16xi1>, vector<16x16xf32>
    %48 = arith.addf %38, %47 : vector<16x16xf32>
    %c0_38 = arith.constant 0 : index
    %c2_39 = arith.constant 2 : index
    %c0_40 = arith.constant 0 : index
    %c0_41 = arith.constant 0 : index
    %49 = vector.load %arg2[%c0_38, %c2_39, %c0_40, %c0_41] : memref<1x8x16x16xf32, #tpu.memory_space<vmem>>, vector<1x1x16x16xf32>
    %50 = vector.shape_cast %49 : vector<1x1x16x16xf32> to vector<16x16xf32>
    %51 = arith.subf %50, %26 : vector<16x16xf32>
    %52 = math.exp %51 : vector<16x16xf32>
    %53 = arith.addf %43, %52 : vector<16x16xf32>
    %c2_i32 = arith.constant 2 : i32
    %54 = vector.broadcast %c2_i32 : i32 to vector<16x16xi32>
    %55 = arith.cmpi eq, %1, %54 : vector<16x16xi32>
    %cst_42 = arith.constant 0.000000e+00 : f32
    %56 = vector.broadcast %cst_42 : f32 to vector<16x16xf32>
    %57 = arith.select %55, %50, %56 : vector<16x16xi1>, vector<16x16xf32>
    %58 = arith.addf %48, %57 : vector<16x16xf32>
    %c0_43 = arith.constant 0 : index
    %c3_44 = arith.constant 3 : index
    %c0_45 = arith.constant 0 : index
    %c0_46 = arith.constant 0 : index
    %59 = vector.load %arg2[%c0_43, %c3_44, %c0_45, %c0_46] : memref<1x8x16x16xf32, #tpu.memory_space<vmem>>, vector<1x1x16x16xf32>
    %60 = vector.shape_cast %59 : vector<1x1x16x16xf32> to vector<16x16xf32>
    %61 = arith.subf %60, %26 : vector<16x16xf32>
    %62 = math.exp %61 : vector<16x16xf32>
    %63 = arith.addf %53, %62 : vector<16x16xf32>
    %c3_i32 = arith.constant 3 : i32
    %64 = vector.broadcast %c3_i32 : i32 to vector<16x16xi32>
    %65 = arith.cmpi eq, %1, %64 : vector<16x16xi32>
    %cst_47 = arith.constant 0.000000e+00 : f32
    %66 = vector.broadcast %cst_47 : f32 to vector<16x16xf32>
    %67 = arith.select %65, %60, %66 : vector<16x16xi1>, vector<16x16xf32>
    %68 = arith.addf %58, %67 : vector<16x16xf32>
    %c0_48 = arith.constant 0 : index
    %c4_49 = arith.constant 4 : index
    %c0_50 = arith.constant 0 : index
    %c0_51 = arith.constant 0 : index
    %69 = vector.load %arg2[%c0_48, %c4_49, %c0_50, %c0_51] : memref<1x8x16x16xf32, #tpu.memory_space<vmem>>, vector<1x1x16x16xf32>
    %70 = vector.shape_cast %69 : vector<1x1x16x16xf32> to vector<16x16xf32>
    %71 = arith.subf %70, %26 : vector<16x16xf32>
    %72 = math.exp %71 : vector<16x16xf32>
    %73 = arith.addf %63, %72 : vector<16x16xf32>
    %c4_i32 = arith.constant 4 : i32
    %74 = vector.broadcast %c4_i32 : i32 to vector<16x16xi32>
    %75 = arith.cmpi eq, %1, %74 : vector<16x16xi32>
    %cst_52 = arith.constant 0.000000e+00 : f32
    %76 = vector.broadcast %cst_52 : f32 to vector<16x16xf32>
    %77 = arith.select %75, %70, %76 : vector<16x16xi1>, vector<16x16xf32>
    %78 = arith.addf %68, %77 : vector<16x16xf32>
    %c0_53 = arith.constant 0 : index
    %c5_54 = arith.constant 5 : index
    %c0_55 = arith.constant 0 : index
    %c0_56 = arith.constant 0 : index
    %79 = vector.load %arg2[%c0_53, %c5_54, %c0_55, %c0_56] : memref<1x8x16x16xf32, #tpu.memory_space<vmem>>, vector<1x1x16x16xf32>
    %80 = vector.shape_cast %79 : vector<1x1x16x16xf32> to vector<16x16xf32>
    %81 = arith.subf %80, %26 : vector<16x16xf32>
    %82 = math.exp %81 : vector<16x16xf32>
    %83 = arith.addf %73, %82 : vector<16x16xf32>
    %c5_i32 = arith.constant 5 : i32
    %84 = vector.broadcast %c5_i32 : i32 to vector<16x16xi32>
    %85 = arith.cmpi eq, %1, %84 : vector<16x16xi32>
    %cst_57 = arith.constant 0.000000e+00 : f32
    %86 = vector.broadcast %cst_57 : f32 to vector<16x16xf32>
    %87 = arith.select %85, %80, %86 : vector<16x16xi1>, vector<16x16xf32>
    %88 = arith.addf %78, %87 : vector<16x16xf32>
    %c0_58 = arith.constant 0 : index
    %c6_59 = arith.constant 6 : index
    %c0_60 = arith.constant 0 : index
    %c0_61 = arith.constant 0 : index
    %89 = vector.load %arg2[%c0_58, %c6_59, %c0_60, %c0_61] : memref<1x8x16x16xf32, #tpu.memory_space<vmem>>, vector<1x1x16x16xf32>
    %90 = vector.shape_cast %89 : vector<1x1x16x16xf32> to vector<16x16xf32>
    %91 = arith.subf %90, %26 : vector<16x16xf32>
    %92 = math.exp %91 : vector<16x16xf32>
    %93 = arith.addf %83, %92 : vector<16x16xf32>
    %c6_i32 = arith.constant 6 : i32
    %94 = vector.broadcast %c6_i32 : i32 to vector<16x16xi32>
    %95 = arith.cmpi eq, %1, %94 : vector<16x16xi32>
    %cst_62 = arith.constant 0.000000e+00 : f32
    %96 = vector.broadcast %cst_62 : f32 to vector<16x16xf32>
    %97 = arith.select %95, %90, %96 : vector<16x16xi1>, vector<16x16xf32>
    %98 = arith.addf %88, %97 : vector<16x16xf32>
    %c0_63 = arith.constant 0 : index
    %c7_64 = arith.constant 7 : index
    %c0_65 = arith.constant 0 : index
    %c0_66 = arith.constant 0 : index
    %99 = vector.load %arg2[%c0_63, %c7_64, %c0_65, %c0_66] : memref<1x8x16x16xf32, #tpu.memory_space<vmem>>, vector<1x1x16x16xf32>
    %100 = vector.shape_cast %99 : vector<1x1x16x16xf32> to vector<16x16xf32>
    %101 = arith.subf %100, %26 : vector<16x16xf32>
    %102 = math.exp %101 : vector<16x16xf32>
    %103 = arith.addf %93, %102 : vector<16x16xf32>
    %c7_i32 = arith.constant 7 : i32
    %104 = vector.broadcast %c7_i32 : i32 to vector<16x16xi32>
    %105 = arith.cmpi eq, %1, %104 : vector<16x16xi32>
    %cst_67 = arith.constant 0.000000e+00 : f32
    %106 = vector.broadcast %cst_67 : f32 to vector<16x16xf32>
    %107 = arith.select %105, %100, %106 : vector<16x16xi1>, vector<16x16xf32>
    %108 = arith.addf %98, %107 : vector<16x16xf32>
    %109 = arith.subf %108, %26 : vector<16x16xf32>
    %110 = math.log %103 : vector<16x16xf32>
    %111 = arith.subf %109, %110 : vector<16x16xf32>
    %cst_68 = arith.constant 1.000000e+00 : f32
    %112 = vector.broadcast %cst_68 : f32 to vector<16x16xf32>
    %113 = arith.select %3, %111, %112 : vector<16x16xi1>, vector<16x16xf32>
    %c0_69 = arith.constant 0 : index
    %c0_70 = arith.constant 0 : index
    %c0_71 = arith.constant 0 : index
    %114 = vector.load %arg4[%c0_69, %c0_70, %c0_71] : memref<1x16x16xf32, #tpu.memory_space<vmem>>, vector<1x16x16xf32>
    %115 = vector.shape_cast %114 : vector<1x16x16xf32> to vector<16x16xf32>
    %116 = vector.shape_cast %113 : vector<16x16xf32> to vector<1x16x16xf32>
    tpu.vector_store %arg4[%c0_69, %c0_70, %c0_71], %116 {strides = array<i32>} : memref<1x16x16xf32, #tpu.memory_space<vmem>>, vector<1x16x16xf32>,
    %117 = math.exp %113 : vector<16x16xf32>
    %118 = tpu.iota {dimensions = array<i32: 3>} : vector<1x1x8x128xi32>
    %119 = tpu.iota {dimensions = array<i32: 2>} : vector<1x1x8x128xi32>
    %cst_72 = arith.constant 0.000000e+00 : f32
    %120 = vector.broadcast %cst_72 : f32 to vector<1x1x8x128xf32>
    %cst_73 = arith.constant 1.50463268E-36 : f32
    %121 = vector.broadcast %cst_73 : f32 to vector<16x16xf32>
    %122 = arith.cmpf ole, %117, %121 : vector<16x16xf32>
    %123 = arith.extui %122 : vector<16x16xi1> to vector<16x16xi32>
    %124 = arith.sitofp %123 : vector<16x16xi32> to vector<16x16xf32>
    %125 = vector.shape_cast %124 : vector<16x16xf32> to vector<1x16x16xf32>
    %cst_74 = arith.constant dense<0.000000e+00> : vector<1xf32>
    %126 = vector.multi_reduction <add>, %125, %cst_74 [1, 2] : vector<1x16x16xf32> to vector<1xf32>
    %127 = vector.shape_cast %126 : vector<1xf32> to vector<1x1x1xf32>
    %128 = vector.extract %127[0, 0, 0] : f32 from vector<1x1x1xf32>
    %c0_i32_75 = arith.constant 0 : i32
    %129 = vector.broadcast %c0_i32_75 : i32 to vector<1x1x8x128xi32>
    %130 = arith.cmpi eq, %118, %129 : vector<1x1x8x128xi32>
    %c0_i32_76 = arith.constant 0 : i32
    %131 = vector.broadcast %c0_i32_76 : i32 to vector<1x1x8x128xi32>
    %132 = arith.cmpi eq, %119, %131 : vector<1x1x8x128xi32>
    %133 = arith.andi %130, %132 : vector<1x1x8x128xi1>
    %134 = vector.broadcast %128 : f32 to vector<1x1x8x128xf32>
    %135 = arith.select %133, %134, %120 : vector<1x1x8x128xi1>, vector<1x1x8x128xf32>
    %cst_77 = arith.constant 3.85185966E-34 : f32
    %136 = vector.broadcast %cst_77 : f32 to vector<16x16xf32>
    %137 = arith.cmpf ole, %117, %136 : vector<16x16xf32>
    %138 = arith.extui %137 : vector<16x16xi1> to vector<16x16xi32>
    %139 = arith.sitofp %138 : vector<16x16xi32> to vector<16x16xf32>
    %140 = vector.shape_cast %139 : vector<16x16xf32> to vector<1x16x16xf32>
    %cst_78 = arith.constant dense<0.000000e+00> : vector<1xf32>
    %141 = vector.multi_reduction <add>, %140, %cst_78 [1, 2] : vector<1x16x16xf32> to vector<1xf32>
    %142 = vector.shape_cast %141 : vector<1xf32> to vector<1x1x1xf32>
    %143 = vector.extract %142[0, 0, 0] : f32 from vector<1x1x1xf32>
    %c1_i32_79 = arith.constant 1 : i32
    %144 = vector.broadcast %c1_i32_79 : i32 to vector<1x1x8x128xi32>
    %145 = arith.cmpi eq, %118, %144 : vector<1x1x8x128xi32>
    %c0_i32_80 = arith.constant 0 : i32
    %146 = vector.broadcast %c0_i32_80 : i32 to vector<1x1x8x128xi32>
    %147 = arith.cmpi eq, %119, %146 : vector<1x1x8x128xi32>
    %148 = arith.andi %145, %147 : vector<1x1x8x128xi1>
    %149 = vector.broadcast %143 : f32 to vector<1x1x8x128xf32>
    %150 = arith.select %148, %149, %135 : vector<1x1x8x128xi1>, vector<1x1x8x128xf32>
    %cst_81 = arith.constant 9.86076073E-32 : f32
    %151 = vector.broadcast %cst_81 : f32 to vector<16x16xf32>
    %152 = arith.cmpf ole, %117, %151 : vector<16x16xf32>
    %153 = arith.extui %152 : vector<16x16xi1> to vector<16x16xi32>
    %154 = arith.sitofp %153 : vector<16x16xi32> to vector<16x16xf32>
    %155 = vector.shape_cast %154 : vector<16x16xf32> to vector<1x16x16xf32>
    %cst_82 = arith.constant dense<0.000000e+00> : vector<1xf32>
    %156 = vector.multi_reduction <add>, %155, %cst_82 [1, 2] : vector<1x16x16xf32> to vector<1xf32>
    %157 = vector.shape_cast %156 : vector<1xf32> to vector<1x1x1xf32>
    %158 = vector.extract %157[0, 0, 0] : f32 from vector<1x1x1xf32>
    %c2_i32_83 = arith.constant 2 : i32
    %159 = vector.broadcast %c2_i32_83 : i32 to vector<1x1x8x128xi32>
    %160 = arith.cmpi eq, %118, %159 : vector<1x1x8x128xi32>
    %c0_i32_84 = arith.constant 0 : i32
    %161 = vector.broadcast %c0_i32_84 : i32 to vector<1x1x8x128xi32>
    %162 = arith.cmpi eq, %119, %161 : vector<1x1x8x128xi32>
    %163 = arith.andi %160, %162 : vector<1x1x8x128xi1>
    %164 = vector.broadcast %158 : f32 to vector<1x1x8x128xf32>
    %165 = arith.select %163, %164, %150 : vector<1x1x8x128xi1>, vector<1x1x8x128xf32>
    %cst_85 = arith.constant 2.52435475E-29 : f32
    %166 = vector.broadcast %cst_85 : f32 to vector<16x16xf32>
    %167 = arith.cmpf ole, %117, %166 : vector<16x16xf32>
    %168 = arith.extui %167 : vector<16x16xi1> to vector<16x16xi32>
    %169 = arith.sitofp %168 : vector<16x16xi32> to vector<16x16xf32>
    %170 = vector.shape_cast %169 : vector<16x16xf32> to vector<1x16x16xf32>
    %cst_86 = arith.constant dense<0.000000e+00> : vector<1xf32>
    %171 = vector.multi_reduction <add>, %170, %cst_86 [1, 2] : vector<1x16x16xf32> to vector<1xf32>
    %172 = vector.shape_cast %171 : vector<1xf32> to vector<1x1x1xf32>
    %173 = vector.extract %172[0, 0, 0] : f32 from vector<1x1x1xf32>
    %c3_i32_87 = arith.constant 3 : i32
    %174 = vector.broadcast %c3_i32_87 : i32 to vector<1x1x8x128xi32>
    %175 = arith.cmpi eq, %118, %174 : vector<1x1x8x128xi32>
    %c0_i32_88 = arith.constant 0 : i32
    %176 = vector.broadcast %c0_i32_88 : i32 to vector<1x1x8x128xi32>
    %177 = arith.cmpi eq, %119, %176 : vector<1x1x8x128xi32>
    %178 = arith.andi %175, %177 : vector<1x1x8x128xi1>
    %179 = vector.broadcast %173 : f32 to vector<1x1x8x128xf32>
    %180 = arith.select %178, %179, %165 : vector<1x1x8x128xi1>, vector<1x1x8x128xf32>
    %cst_89 = arith.constant 6.46234815E-27 : f32
    %181 = vector.broadcast %cst_89 : f32 to vector<16x16xf32>
    %182 = arith.cmpf ole, %117, %181 : vector<16x16xf32>
    %183 = arith.extui %182 : vector<16x16xi1> to vector<16x16xi32>
    %184 = arith.sitofp %183 : vector<16x16xi32> to vector<16x16xf32>
    %185 = vector.shape_cast %184 : vector<16x16xf32> to vector<1x16x16xf32>
    %cst_90 = arith.constant dense<0.000000e+00> : vector<1xf32>
    %186 = vector.multi_reduction <add>, %185, %cst_90 [1, 2] : vector<1x16x16xf32> to vector<1xf32>
    %187 = vector.shape_cast %186 : vector<1xf32> to vector<1x1x1xf32>
    %188 = vector.extract %187[0, 0, 0] : f32 from vector<1x1x1xf32>
    %c4_i32_91 = arith.constant 4 : i32
    %189 = vector.broadcast %c4_i32_91 : i32 to vector<1x1x8x128xi32>
    %190 = arith.cmpi eq, %118, %189 : vector<1x1x8x128xi32>
    %c0_i32_92 = arith.constant 0 : i32
    %191 = vector.broadcast %c0_i32_92 : i32 to vector<1x1x8x128xi32>
    %192 = arith.cmpi eq, %119, %191 : vector<1x1x8x128xi32>
    %193 = arith.andi %190, %192 : vector<1x1x8x128xi1>
    %194 = vector.broadcast %188 : f32 to vector<1x1x8x128xf32>
    %195 = arith.select %193, %194, %180 : vector<1x1x8x128xi1>, vector<1x1x8x128xf32>
    %cst_93 = arith.constant 1.65436113E-24 : f32
    %196 = vector.broadcast %cst_93 : f32 to vector<16x16xf32>
    %197 = arith.cmpf ole, %117, %196 : vector<16x16xf32>
    %198 = arith.extui %197 : vector<16x16xi1> to vector<16x16xi32>
    %199 = arith.sitofp %198 : vector<16x16xi32> to vector<16x16xf32>
    %200 = vector.shape_cast %199 : vector<16x16xf32> to vector<1x16x16xf32>
    %cst_94 = arith.constant dense<0.000000e+00> : vector<1xf32>
    %201 = vector.multi_reduction <add>, %200, %cst_94 [1, 2] : vector<1x16x16xf32> to vector<1xf32>
    %202 = vector.shape_cast %201 : vector<1xf32> to vector<1x1x1xf32>
    %203 = vector.extract %202[0, 0, 0] : f32 from vector<1x1x1xf32>
    %c5_i32_95 = arith.constant 5 : i32
    %204 = vector.broadcast %c5_i32_95 : i32 to vector<1x1x8x128xi32>
    %205 = arith.cmpi eq, %118, %204 : vector<1x1x8x128xi32>
    %c0_i32_96 = arith.constant 0 : i32
    %206 = vector.broadcast %c0_i32_96 : i32 to vector<1x1x8x128xi32>
    %207 = arith.cmpi eq, %119, %206 : vector<1x1x8x128xi32>
    %208 = arith.andi %205, %207 : vector<1x1x8x128xi1>
    %209 = vector.broadcast %203 : f32 to vector<1x1x8x128xf32>
    %210 = arith.select %208, %209, %195 : vector<1x1x8x128xi1>, vector<1x1x8x128xf32>
    %cst_97 = arith.constant 4.23516448E-22 : f32
    %211 = vector.broadcast %cst_97 : f32 to vector<16x16xf32>
    %212 = arith.cmpf ole, %117, %211 : vector<16x16xf32>
    %213 = arith.extui %212 : vector<16x16xi1> to vector<16x16xi32>
    %214 = arith.sitofp %213 : vector<16x16xi32> to vector<16x16xf32>
    %215 = vector.shape_cast %214 : vector<16x16xf32> to vector<1x16x16xf32>
    %cst_98 = arith.constant dense<0.000000e+00> : vector<1xf32>
    %216 = vector.multi_reduction <add>, %215, %cst_98 [1, 2] : vector<1x16x16xf32> to vector<1xf32>
    %217 = vector.shape_cast %216 : vector<1xf32> to vector<1x1x1xf32>
    %218 = vector.extract %217[0, 0, 0] : f32 from vector<1x1x1xf32>
    %c6_i32_99 = arith.constant 6 : i32
    %219 = vector.broadcast %c6_i32_99 : i32 to vector<1x1x8x128xi32>
    %220 = arith.cmpi eq, %118, %219 : vector<1x1x8x128xi32>
    %c0_i32_100 = arith.constant 0 : i32
    %221 = vector.broadcast %c0_i32_100 : i32 to vector<1x1x8x128xi32>
    %222 = arith.cmpi eq, %119, %221 : vector<1x1x8x128xi32>
    %223 = arith.andi %220, %222 : vector<1x1x8x128xi1>
    %224 = vector.broadcast %218 : f32 to vector<1x1x8x128xf32>
    %225 = arith.select %223, %224, %210 : vector<1x1x8x128xi1>, vector<1x1x8x128xf32>
    %cst_101 = arith.constant 1.08420211E-19 : f32
    %226 = vector.broadcast %cst_101 : f32 to vector<16x16xf32>
    %227 = arith.cmpf ole, %117, %226 : vector<16x16xf32>
    %228 = arith.extui %227 : vector<16x16xi1> to vector<16x16xi32>
    %229 = arith.sitofp %228 : vector<16x16xi32> to vector<16x16xf32>
    %230 = vector.shape_cast %229 : vector<16x16xf32> to vector<1x16x16xf32>
    %cst_102 = arith.constant dense<0.000000e+00> : vector<1xf32>
    %231 = vector.multi_reduction <add>, %230, %cst_102 [1, 2] : vector<1x16x16xf32> to vector<1xf32>
    %232 = vector.shape_cast %231 : vector<1xf32> to vector<1x1x1xf32>
    %233 = vector.extract %232[0, 0, 0] : f32 from vector<1x1x1xf32>
    %c7_i32_103 = arith.constant 7 : i32
    %234 = vector.broadcast %c7_i32_103 : i32 to vector<1x1x8x128xi32>
    %235 = arith.cmpi eq, %118, %234 : vector<1x1x8x128xi32>
    %c0_i32_104 = arith.constant 0 : i32
    %236 = vector.broadcast %c0_i32_104 : i32 to vector<1x1x8x128xi32>
    %237 = arith.cmpi eq, %119, %236 : vector<1x1x8x128xi32>
    %238 = arith.andi %235, %237 : vector<1x1x8x128xi1>
    %239 = vector.broadcast %233 : f32 to vector<1x1x8x128xf32>
    %240 = arith.select %238, %239, %225 : vector<1x1x8x128xi1>, vector<1x1x8x128xf32>
    %cst_105 = arith.constant 2.7755574E-17 : f32
    %241 = vector.broadcast %cst_105 : f32 to vector<16x16xf32>
    %242 = arith.cmpf ole, %117, %241 : vector<16x16xf32>
    %243 = arith.extui %242 : vector<16x16xi1> to vector<16x16xi32>
    %244 = arith.sitofp %243 : vector<16x16xi32> to vector<16x16xf32>
    %245 = vector.shape_cast %244 : vector<16x16xf32> to vector<1x16x16xf32>
    %cst_106 = arith.constant dense<0.000000e+00> : vector<1xf32>
    %246 = vector.multi_reduction <add>, %245, %cst_106 [1, 2] : vector<1x16x16xf32> to vector<1xf32>
    %247 = vector.shape_cast %246 : vector<1xf32> to vector<1x1x1xf32>
    %248 = vector.extract %247[0, 0, 0] : f32 from vector<1x1x1xf32>
    %c8_i32 = arith.constant 8 : i32
    %249 = vector.broadcast %c8_i32 : i32 to vector<1x1x8x128xi32>
    %250 = arith.cmpi eq, %118, %249 : vector<1x1x8x128xi32>
    %c0_i32_107 = arith.constant 0 : i32
    %251 = vector.broadcast %c0_i32_107 : i32 to vector<1x1x8x128xi32>
    %252 = arith.cmpi eq, %119, %251 : vector<1x1x8x128xi32>
    %253 = arith.andi %250, %252 : vector<1x1x8x128xi1>
    %254 = vector.broadcast %248 : f32 to vector<1x1x8x128xf32>
    %255 = arith.select %253, %254, %240 : vector<1x1x8x128xi1>, vector<1x1x8x128xf32>
    %cst_108 = arith.constant 7.10542693E-15 : f32
    %256 = vector.broadcast %cst_108 : f32 to vector<16x16xf32>
    %257 = arith.cmpf ole, %117, %256 : vector<16x16xf32>
    %258 = arith.extui %257 : vector<16x16xi1> to vector<16x16xi32>
    %259 = arith.sitofp %258 : vector<16x16xi32> to vector<16x16xf32>
    %260 = vector.shape_cast %259 : vector<16x16xf32> to vector<1x16x16xf32>
    %cst_109 = arith.constant dense<0.000000e+00> : vector<1xf32>
    %261 = vector.multi_reduction <add>, %260, %cst_109 [1, 2] : vector<1x16x16xf32> to vector<1xf32>
    %262 = vector.shape_cast %261 : vector<1xf32> to vector<1x1x1xf32>
    %263 = vector.extract %262[0, 0, 0] : f32 from vector<1x1x1xf32>
    %c9_i32 = arith.constant 9 : i32
    %264 = vector.broadcast %c9_i32 : i32 to vector<1x1x8x128xi32>
    %265 = arith.cmpi eq, %118, %264 : vector<1x1x8x128xi32>
    %c0_i32_110 = arith.constant 0 : i32
    %266 = vector.broadcast %c0_i32_110 : i32 to vector<1x1x8x128xi32>
    %267 = arith.cmpi eq, %119, %266 : vector<1x1x8x128xi32>
    %268 = arith.andi %265, %267 : vector<1x1x8x128xi1>
    %269 = vector.broadcast %263 : f32 to vector<1x1x8x128xf32>
    %270 = arith.select %268, %269, %255 : vector<1x1x8x128xi1>, vector<1x1x8x128xf32>
    %cst_111 = arith.constant 1.8189893E-12 : f32
    %271 = vector.broadcast %cst_111 : f32 to vector<16x16xf32>
    %272 = arith.cmpf ole, %117, %271 : vector<16x16xf32>
    %273 = arith.extui %272 : vector<16x16xi1> to vector<16x16xi32>
    %274 = arith.sitofp %273 : vector<16x16xi32> to vector<16x16xf32>
    %275 = vector.shape_cast %274 : vector<16x16xf32> to vector<1x16x16xf32>
    %cst_112 = arith.constant dense<0.000000e+00> : vector<1xf32>
    %276 = vector.multi_reduction <add>, %275, %cst_112 [1, 2] : vector<1x16x16xf32> to vector<1xf32>
    %277 = vector.shape_cast %276 : vector<1xf32> to vector<1x1x1xf32>
    %278 = vector.extract %277[0, 0, 0] : f32 from vector<1x1x1xf32>
    %c10_i32 = arith.constant 10 : i32
    %279 = vector.broadcast %c10_i32 : i32 to vector<1x1x8x128xi32>
    %280 = arith.cmpi eq, %118, %279 : vector<1x1x8x128xi32>
    %c0_i32_113 = arith.constant 0 : i32
    %281 = vector.broadcast %c0_i32_113 : i32 to vector<1x1x8x128xi32>
    %282 = arith.cmpi eq, %119, %281 : vector<1x1x8x128xi32>
    %283 = arith.andi %280, %282 : vector<1x1x8x128xi1>
    %284 = vector.broadcast %278 : f32 to vector<1x1x8x128xf32>
    %285 = arith.select %283, %284, %270 : vector<1x1x8x128xi1>, vector<1x1x8x128xf32>
    %cst_114 = arith.constant 4.6566126E-10 : f32
    %286 = vector.broadcast %cst_114 : f32 to vector<16x16xf32>
    %287 = arith.cmpf ole, %117, %286 : vector<16x16xf32>
    %288 = arith.extui %287 : vector<16x16xi1> to vector<16x16xi32>
    %289 = arith.sitofp %288 : vector<16x16xi32> to vector<16x16xf32>
    %290 = vector.shape_cast %289 : vector<16x16xf32> to vector<1x16x16xf32>
    %cst_115 = arith.constant dense<0.000000e+00> : vector<1xf32>
    %291 = vector.multi_reduction <add>, %290, %cst_115 [1, 2] : vector<1x16x16xf32> to vector<1xf32>
    %292 = vector.shape_cast %291 : vector<1xf32> to vector<1x1x1xf32>
    %293 = vector.extract %292[0, 0, 0] : f32 from vector<1x1x1xf32>
    %c11_i32 = arith.constant 11 : i32
    %294 = vector.broadcast %c11_i32 : i32 to vector<1x1x8x128xi32>
    %295 = arith.cmpi eq, %118, %294 : vector<1x1x8x128xi32>
    %c0_i32_116 = arith.constant 0 : i32
    %296 = vector.broadcast %c0_i32_116 : i32 to vector<1x1x8x128xi32>
    %297 = arith.cmpi eq, %119, %296 : vector<1x1x8x128xi32>
    %298 = arith.andi %295, %297 : vector<1x1x8x128xi1>
    %299 = vector.broadcast %293 : f32 to vector<1x1x8x128xf32>
    %300 = arith.select %298, %299, %285 : vector<1x1x8x128xi1>, vector<1x1x8x128xf32>
    %cst_117 = arith.constant 1.19209282E-7 : f32
    %301 = vector.broadcast %cst_117 : f32 to vector<16x16xf32>
    %302 = arith.cmpf ole, %117, %301 : vector<16x16xf32>
    %303 = arith.extui %302 : vector<16x16xi1> to vector<16x16xi32>
    %304 = arith.sitofp %303 : vector<16x16xi32> to vector<16x16xf32>
    %305 = vector.shape_cast %304 : vector<16x16xf32> to vector<1x16x16xf32>
    %cst_118 = arith.constant dense<0.000000e+00> : vector<1xf32>
    %306 = vector.multi_reduction <add>, %305, %cst_118 [1, 2] : vector<1x16x16xf32> to vector<1xf32>
    %307 = vector.shape_cast %306 : vector<1xf32> to vector<1x1x1xf32>
    %308 = vector.extract %307[0, 0, 0] : f32 from vector<1x1x1xf32>
    %c12_i32 = arith.constant 12 : i32
    %309 = vector.broadcast %c12_i32 : i32 to vector<1x1x8x128xi32>
    %310 = arith.cmpi eq, %118, %309 : vector<1x1x8x128xi32>
    %c0_i32_119 = arith.constant 0 : i32
    %311 = vector.broadcast %c0_i32_119 : i32 to vector<1x1x8x128xi32>
    %312 = arith.cmpi eq, %119, %311 : vector<1x1x8x128xi32>
    %313 = arith.andi %310, %312 : vector<1x1x8x128xi1>
    %314 = vector.broadcast %308 : f32 to vector<1x1x8x128xf32>
    %315 = arith.select %313, %314, %300 : vector<1x1x8x128xi1>, vector<1x1x8x128xf32>
    %cst_120 = arith.constant 3.05175763E-5 : f32
    %316 = vector.broadcast %cst_120 : f32 to vector<16x16xf32>
    %317 = arith.cmpf ole, %117, %316 : vector<16x16xf32>
    %318 = arith.extui %317 : vector<16x16xi1> to vector<16x16xi32>
    %319 = arith.sitofp %318 : vector<16x16xi32> to vector<16x16xf32>
    %320 = vector.shape_cast %319 : vector<16x16xf32> to vector<1x16x16xf32>
    %cst_121 = arith.constant dense<0.000000e+00> : vector<1xf32>
    %321 = vector.multi_reduction <add>, %320, %cst_121 [1, 2] : vector<1x16x16xf32> to vector<1xf32>
    %322 = vector.shape_cast %321 : vector<1xf32> to vector<1x1x1xf32>
    %323 = vector.extract %322[0, 0, 0] : f32 from vector<1x1x1xf32>
    %c13_i32 = arith.constant 13 : i32
    %324 = vector.broadcast %c13_i32 : i32 to vector<1x1x8x128xi32>
    %325 = arith.cmpi eq, %118, %324 : vector<1x1x8x128xi32>
    %c0_i32_122 = arith.constant 0 : i32
    %326 = vector.broadcast %c0_i32_122 : i32 to vector<1x1x8x128xi32>
    %327 = arith.cmpi eq, %119, %326 : vector<1x1x8x128xi32>
    %328 = arith.andi %325, %327 : vector<1x1x8x128xi1>
    %329 = vector.broadcast %323 : f32 to vector<1x1x8x128xf32>
    %330 = arith.select %328, %329, %315 : vector<1x1x8x128xi1>, vector<1x1x8x128xf32>
    %cst_123 = arith.constant 0.00781249953 : f32
    %331 = vector.broadcast %cst_123 : f32 to vector<16x16xf32>
    %332 = arith.cmpf ole, %117, %331 : vector<16x16xf32>
    %333 = arith.extui %332 : vector<16x16xi1> to vector<16x16xi32>
    %334 = arith.sitofp %333 : vector<16x16xi32> to vector<16x16xf32>
    %335 = vector.shape_cast %334 : vector<16x16xf32> to vector<1x16x16xf32>
    %cst_124 = arith.constant dense<0.000000e+00> : vector<1xf32>
    %336 = vector.multi_reduction <add>, %335, %cst_124 [1, 2] : vector<1x16x16xf32> to vector<1xf32>
    %337 = vector.shape_cast %336 : vector<1xf32> to vector<1x1x1xf32>
    %338 = vector.extract %337[0, 0, 0] : f32 from vector<1x1x1xf32>
    %c14_i32 = arith.constant 14 : i32
    %339 = vector.broadcast %c14_i32 : i32 to vector<1x1x8x128xi32>
    %340 = arith.cmpi eq, %118, %339 : vector<1x1x8x128xi32>
    %c0_i32_125 = arith.constant 0 : i32
    %341 = vector.broadcast %c0_i32_125 : i32 to vector<1x1x8x128xi32>
    %342 = arith.cmpi eq, %119, %341 : vector<1x1x8x128xi32>
    %343 = arith.andi %340, %342 : vector<1x1x8x128xi1>
    %344 = vector.broadcast %338 : f32 to vector<1x1x8x128xf32>
    %345 = arith.select %343, %344, %330 : vector<1x1x8x128xi1>, vector<1x1x8x128xf32>
    %cst_126 = arith.constant 1.99999988 : f32
    %346 = vector.broadcast %cst_126 : f32 to vector<16x16xf32>
    %347 = arith.cmpf ole, %117, %346 : vector<16x16xf32>
    %348 = arith.extui %347 : vector<16x16xi1> to vector<16x16xi32>
    %349 = arith.sitofp %348 : vector<16x16xi32> to vector<16x16xf32>
    %350 = vector.shape_cast %349 : vector<16x16xf32> to vector<1x16x16xf32>
    %cst_127 = arith.constant dense<0.000000e+00> : vector<1xf32>
    %351 = vector.multi_reduction <add>, %350, %cst_127 [1, 2] : vector<1x16x16xf32> to vector<1xf32>
    %352 = vector.shape_cast %351 : vector<1xf32> to vector<1x1x1xf32>
    %353 = vector.extract %352[0, 0, 0] : f32 from vector<1x1x1xf32>
    %c15_i32 = arith.constant 15 : i32
    %354 = vector.broadcast %c15_i32 : i32 to vector<1x1x8x128xi32>
    %355 = arith.cmpi eq, %118, %354 : vector<1x1x8x128xi32>
    %c0_i32_128 = arith.constant 0 : i32
    %356 = vector.broadcast %c0_i32_128 : i32 to vector<1x1x8x128xi32>
    %357 = arith.cmpi eq, %119, %356 : vector<1x1x8x128xi32>
    %358 = arith.andi %355, %357 : vector<1x1x8x128xi1>
    %359 = vector.broadcast %353 : f32 to vector<1x1x8x128xf32>
    %360 = arith.select %358, %359, %345 : vector<1x1x8x128xi1>, vector<1x1x8x128xf32>
    %c0_129 = arith.constant 0 : index
    %c0_130 = arith.constant 0 : index
    %c0_131 = arith.constant 0 : index
    %c0_132 = arith.constant 0 : index
    %361 = vector.load %arg5[%c0_129, %c0_130, %c0_131, %c0_132] : memref<1x1x8x128xf32, #tpu.memory_space<vmem>>, vector<1x1x8x128xf32>
    tpu.vector_store %arg5[%c0_129, %c0_130, %c0_131, %c0_132], %360 {strides = array<i32>} : memref<1x1x8x128xf32, #tpu.memory_space<vmem>>, vector<1x1x8x128xf32>,
    return
  }
  func.func @transform_0(%arg0: i32, %arg1: i32) -> (i32, i32, i32, i32) {
    %c0_i32 = arith.constant 0 : i32
    %c0_i32_0 = arith.constant 0 : i32
    %c0_i32_1 = arith.constant 0 : i32
    return %arg0, %c0_i32, %arg1, %c0_i32_0 : i32, i32, i32, i32
  }
  func.func @transform_1(%arg0: i32, %arg1: i32) -> (i32, i32, i32) {
    %c0_i32 = arith.constant 0 : i32
    %c0_i32_0 = arith.constant 0 : i32
    return %arg0, %arg1, %c0_i32 : i32, i32, i32
  }
  func.func @transform_2(%arg0: i32, %arg1: i32) -> (i32, i32, i32) {
    %c0_i32 = arith.constant 0 : i32
    %c0_i32_0 = arith.constant 0 : i32
    return %arg0, %arg1, %c0_i32 : i32, i32, i32
  }
  func.func @transform_3(%arg0: i32, %arg1: i32) -> (i32, i32, i32, i32) {
    %c0_i32 = arith.constant 0 : i32
    %c0_i32_0 = arith.constant 0 : i32
    %c0_i32_1 = arith.constant 0 : i32
    return %arg0, %arg1, %c0_i32, %c0_i32_0 : i32, i32, i32, i32
  }
}

</mosaic_0001>

<llo_original>
// kernel: tpu_custom_call.1
$region0: #{tpu_custom_call.1}
  #allocation0 [shape = 'u32[]', space=smem, size = 0x4, offset = 0x4, fixed_abs, tag = 'smem constant byte address 0x4 - core index']
  #allocation1 [shape = 'u32[144,128]{1,0:T(1,128)}', space=vmem, size = 0x12000, scoped, tag = 'internal scratch']
  %s0 = inlined_call_operand.hbm [shape: f32[2,8,16,16], index: 0, kind: input, shape index: {}]
  %s1 = inlined_call_operand.hbm [shape: s32[2,16,16], index: 1, kind: input, shape index: {}]
  %s2 = inlined_call_operand.hbm [shape: f32[2,16,16], index: 2, kind: output, shape index: {0}]
  %s3 = inlined_call_operand.hbm [shape: f32[2,1,8,128], index: 3, kind: output, shape index: {1}]
  %4 = xla_tuple %s2, %s3
  %s5 = sld [smem:[#allocation0]]
  $region57: #{tpu_custom_call.1} parent=0
    _
  %s7 = ssub.s32 1, %s5
  %s8 = scalar_select 0, %s7, %s5
  $region1: #{tpu_custom_call.1} parent=0
    #allocation2 [shape = 'u8[131072]{0}', space=vmem, size = 0x20000, scoped, tag = 'input window, operand 0']
    #allocation3 [shape = 's32[2]{0}', space=sflag, size = 0x8, scoped, tag = 'scoped memory for tpu_custom_call.1']
    #allocation4 [shape = 's32[2]{0}', space=sflag, size = 0x8, scoped, tag = 'scoped memory for tpu_custom_call.1']
    #allocation5 [shape = 'u8[16384]{0}', space=vmem, size = 0x4000, scoped, tag = 'input window, operand 1']
    #allocation6 [shape = 's32[2]{0}', space=sflag, size = 0x8, scoped, tag = 'scoped memory for tpu_custom_call.1']
    #allocation7 [shape = 'u8[16384]{0}', space=vmem, size = 0x4000, scoped, tag = 'output window, operand 0']
    #allocation8 [shape = 'u8[8192]{0}', space=vmem, size = 0x2000, scoped, tag = 'output window, operand 1']
    #allocation9 [shape = 's32[2]{0}', space=sflag, size = 0x8, scoped, tag = 'scoped memory for tpu_custom_call.1']
    %9 = vsyncpa [#allocation3], 0
    %s10 = scalar_lea.sflag [#allocation3], 1
    %11 = vsyncpa %s10, 0
    %12 = vsyncpa [#allocation6], 0
    %s13 = scalar_lea.sflag [#allocation6], 1
    %14 = vsyncpa %s13, 0
    %15 = vsyncpa [#allocation4], 0
    %s16 = scalar_lea.sflag [#allocation4], 1
    %17 = vsyncpa %s16, 0
    %18 = vsyncpa [#allocation9], 0
    %s19 = scalar_lea.sflag [#allocation9], 1
    %20 = vsyncpa %s19, 0
    loop: start=0, step=1, limit=4
    $region2: #{tpu_custom_call.1} parent=1 // loop_pre_header
      _
    $region3: #{tpu_custom_call.1} parent=1 // loop_header
      %s22 = sphi 0, %s26
      %p23 = scmp.ge.s32.totalorder %s22, 4
      %s29 = sphi 0, %s41
      %s30 = sphi 0, %s37
      %s31 = sphi 0, %s29
      %s32 = sphi 0, %s30
      %s33 = sphi 0, %s31
      %s34 = sphi 0, %s32
      %s46 = sphi 0, %s48
      %s49 = sphi 0, %s46
      %s50 = sphi 0, %s49
      %s66 = sphi 0, %s50
      %s74 = sphi 0, %s76
      %s77 = sphi 0, %s74
      %s78 = sphi 0, %s77
      %s94 = sphi 0, %s78
      %s102 = sphi 0, %s104
      %s105 = sphi 0, %s102
      %s106 = sphi 0, %s105
      %s122 = sphi 0, %s106
      %s130 = sphi 0, %s132
      %s133 = sphi 0, %s130
      %s134 = sphi 0, %s133
      %s150 = sphi 0, %s134
    $region4: #{tpu_custom_call.1} parent=1 // loop_header_branch
      %25 = sbr.rel (%p23) target = $region8
    $region5: #{tpu_custom_call.1} parent=1 // loop_body
      %s27 = ssub.s32 %s22, 1
      %s28 = ssub.s32 %s22, 2
      %s35 = sadd.s32 1, %s30
      %p36 = scmp.ge.s32.totalorder %s35, 1
      %s37 = scalar_select %p36, 0, %s35
      %s38 = sadd.s32 1, %s29
      %s39 = scalar_select %p36, %s38, %s29
      %p40 = scmp.ge.s32.totalorder %s39, 2
      %s41 = scalar_select %p40, 0, %s39
      %s42 = ssub.s32 %s29, %s41
      %s43 = ssub.s32 %s30, %s37
      %s44 = sor.u32 %s42, %s43
      %p45 = scmp.eq.s32.totalorder %s44, 0
      %s47 = sadd.s32 %s46, 1
      %s48 = scalar_select %p45, %s46, %s47
      %p51 = pneg %p45
      %p52 = scmp.eq.s32.totalorder %s22, 1
      %p53 = por %p51, %p52
      %p54 = scmp.ne.s32.totalorder %s46, %s49
      %p55 = scmp.eq.s32.totalorder %s22, 0
      %p56 = por %p54, %p55
      %p57 = scmp.ne.s32.totalorder %s46, %s49
      %p58 = scmp.eq.s32.totalorder %s27, 1
      %p59 = por %p57, %p58
      %p60 = scmp.ne.s32.totalorder %s49, %s50
      %p61 = scmp.eq.s32.totalorder %s27, 0
      %p62 = por %p60, %p61
      %p63 = scmp.ne.s32.totalorder %s49, %s50
      %p64 = scmp.eq.s32.totalorder %s28, 1
      %p65 = por %p63, %p64
      %p67 = scmp.ne.s32.totalorder %s50, %s66
      %p68 = scmp.eq.s32.totalorder %s28, 0
      %p69 = por %p67, %p68
      %s70 = ssub.s32 %s29, %s41
      %s71 = ssub.s32 %s30, %s37
      %s72 = sor.u32 %s70, %s71
      %p73 = scmp.eq.s32.totalorder %s72, 0
      %s75 = sadd.s32 %s74, 1
      %s76 = scalar_select %p73, %s74, %s75
      %p79 = pneg %p73
      %p80 = scmp.eq.s32.totalorder %s22, 1
      %p81 = por %p79, %p80
      %p82 = scmp.ne.s32.totalorder %s74, %s77
      %p83 = scmp.eq.s32.totalorder %s22, 0
      %p84 = por %p82, %p83
      %p85 = scmp.ne.s32.totalorder %s74, %s77
      %p86 = scmp.eq.s32.totalorder %s27, 1
      %p87 = por %p85, %p86
      %p88 = scmp.ne.s32.totalorder %s77, %s78
      %p89 = scmp.eq.s32.totalorder %s27, 0
      %p90 = por %p88, %p89
      %p91 = scmp.ne.s32.totalorder %s77, %s78
      %p92 = scmp.eq.s32.totalorder %s28, 1
      %p93 = por %p91, %p92
      %p95 = scmp.ne.s32.totalorder %s78, %s94
      %p96 = scmp.eq.s32.totalorder %s28, 0
      %p97 = por %p95, %p96
      %s98 = ssub.s32 %s29, %s41
      %s99 = ssub.s32 %s30, %s37
      %s100 = sor.u32 %s98, %s99
      %p101 = scmp.eq.s32.totalorder %s100, 0
      %s103 = sadd.s32 %s102, 1
      %s104 = scalar_select %p101, %s102, %s103
      %p107 = pneg %p101
      %p108 = scmp.eq.s32.totalorder %s22, 1
      %p109 = por %p107, %p108
      %p110 = scmp.ne.s32.totalorder %s102, %s105
      %p111 = scmp.eq.s32.totalorder %s22, 0
      %p112 = por %p110, %p111
      %p113 = scmp.ne.s32.totalorder %s102, %s105
      %p114 = scmp.eq.s32.totalorder %s27, 1
      %p115 = por %p113, %p114
      %p116 = scmp.ne.s32.totalorder %s105, %s106
      %p117 = scmp.eq.s32.totalorder %s27, 0
      %p118 = por %p116, %p117
      %p119 = scmp.ne.s32.totalorder %s105, %s106
      %p120 = scmp.eq.s32.totalorder %s28, 1
      %p121 = por %p119, %p120
      %p123 = scmp.ne.s32.totalorder %s106, %s122
      %p124 = scmp.eq.s32.totalorder %s28, 0
      %p125 = por %p123, %p124
      %s126 = ssub.s32 %s29, %s41
      %s127 = ssub.s32 %s30, %s37
      %s128 = sor.u32 %s126, %s127
      %p129 = scmp.eq.s32.totalorder %s128, 0
      %s131 = sadd.s32 %s130, 1
      %s132 = scalar_select %p129, %s130, %s131
      %p135 = pneg %p129
      %p136 = scmp.eq.s32.totalorder %s22, 1
      %p137 = por %p135, %p136
      %p138 = scmp.ne.s32.totalorder %s130, %s133
      %p139 = scmp.eq.s32.totalorder %s22, 0
      %p140 = por %p138, %p139
      %p141 = scmp.ne.s32.totalorder %s130, %s133
      %p142 = scmp.eq.s32.totalorder %s27, 1
      %p143 = por %p141, %p142
      %p144 = scmp.ne.s32.totalorder %s133, %s134
      %p145 = scmp.eq.s32.totalorder %s27, 0
      %p146 = por %p144, %p145
      %p147 = scmp.ne.s32.totalorder %s133, %s134
      %p148 = scmp.eq.s32.totalorder %s28, 1
      %p149 = por %p147, %p148
      %p151 = scmp.ne.s32.totalorder %s134, %s150
      %p152 = scmp.eq.s32.totalorder %s28, 0
      %p153 = por %p151, %p152
      %p154 = scmp.le.s32.totalorder 1, %s22
      %p155 = scmp.lt.s32.totalorder %s22, 3
      %p156 = pnand %p154, %p155
      %p157 = pneg %p156
      // Predicated region
      $region9: #{tpu_custom_call.1} parent=5 // pred_check
        _
      $region10: #{tpu_custom_call.1} parent=5 // pred_check_branch
        %159 = sbr.rel (%p156) target = $region12
      $region11: #{tpu_custom_call.1} parent=5 // pred_region
        %s160 = ssub.s32 %s22, 1
      $region12: #{tpu_custom_call.1} parent=5 // pred_fallthru
        _
      %p161 = scmp.lt.s32.totalorder %s22, 2
      // Predicated region
      $region13: #{tpu_custom_call.1} parent=5 // pred_check
        %p162 = pneg %p161
      $region14: #{tpu_custom_call.1} parent=5 // pred_check_branch
        %164 = sbr.rel (%p162) target = $region16
      $region15: #{tpu_custom_call.1} parent=5 // pred_region
        // Predicated region
        $region17: #{tpu_custom_call.1} parent=15 // pred_check
          %p165 = pneg %p56
        $region18: #{tpu_custom_call.1} parent=15 // pred_check_branch
          %167 = sbr.rel (%p165) target = $region20
        $region19: #{tpu_custom_call.1} parent=15 // pred_region
          %s168 = sand.u32 %s46, 1
          %s169 = scalar_lea.sflag [#allocation3], %s168
          %s170 = sand.u32 %s46, 1
          %s171 = smul.addr %s170, 128
          %s172 = scalar_lea.vmem [#allocation2], %s171
          %s173 = smul.u32 2, %s30
          %s175 = ssub.s32 2048, 2048
          %176 = vsyncadd %s169, %s175
          %s177 = smul.addr %s29, 16
          %s178 = sadd.s32 %s173, %s177
          %s179 = smul.addr %s178, 128
          %s180 = scalar_lea.hbm %s0, %s179
          %s181 = sshll.u32 %s172, 4
          %s182 = int_to_ptr.vmem [resolvable:$true] %s181
          %187 = dma.hbm_to_vmem [thread:$0]  %s180, 2048, %s182, %s169, 128, 128, 8
        $region20: #{tpu_custom_call.1} parent=15 // pred_fallthru
          _
        // Predicated region
        $region21: #{tpu_custom_call.1} parent=15 // pred_check
          %p188 = pneg %p84
        $region22: #{tpu_custom_call.1} parent=15 // pred_check_branch
          %190 = sbr.rel (%p188) target = $region24
        $region23: #{tpu_custom_call.1} parent=15 // pred_region
          %s191 = sand.u32 %s74, 1
          %s192 = scalar_lea.sflag [#allocation6], %s191
          %s193 = sand.u32 %s74, 1
          %s194 = smul.addr %s193, 16
          %s195 = scalar_lea.vmem [#allocation5], %s194
          %s196 = smul.u32 2, %s30
          %s198 = ssub.s32 256, 256
          %199 = vsyncadd %s192, %s198
          %s200 = smul.addr %s29, 2
          %s201 = sadd.s32 %s196, %s200
          %s202 = smul.addr %s201, 128
          %s203 = scalar_lea.hbm %s1, %s202
          %s204 = sshll.u32 %s195, 4
          %s205 = int_to_ptr.vmem [resolvable:$true] %s204
          %210 = dma.hbm_to_vmem [thread:$0]  %s203, 256, %s205, %s192, 128, 128, 8
        $region24: #{tpu_custom_call.1} parent=15 // pred_fallthru
          _
      $region16: #{tpu_custom_call.1} parent=5 // pred_fallthru
        _
      %p211 = scmp.le.s32.totalorder 1, %s22
      %p212 = scmp.lt.s32.totalorder %s22, 3
      %p213 = pnand %p211, %p212
      %p214 = pneg %p213
      // Predicated region
      $region25: #{tpu_custom_call.1} parent=5 // pred_check
        _
      $region26: #{tpu_custom_call.1} parent=5 // pred_check_branch
        %216 = sbr.rel (%p213) target = $region28
      $region27: #{tpu_custom_call.1} parent=5 // pred_region
        %s217 = ssub.s32 %s22, 1
        %s218 = sand.u32 %s49, 1
        %s219 = scalar_lea.sflag [#allocation3], %s218
        %s220 = sand.u32 %s49, 1
        %s221 = smul.addr %s220, 128
        %s222 = scalar_lea.vmem [#allocation2], %s221
        // Predicated region
        $region29: #{tpu_custom_call.1} parent=27 // pred_check
          %p223 = pneg %p62
        $region30: #{tpu_custom_call.1} parent=27 // pred_check_branch
          %225 = sbr.rel (%p223) target = $region32
        $region31: #{tpu_custom_call.1} parent=27 // pred_region
          %226 = dma.done %s219, 2048
        $region32: #{tpu_custom_call.1} parent=27 // pred_fallthru
          _
        %s227 = sand.u32 %s77, 1
        %s228 = scalar_lea.sflag [#allocation6], %s227
        %s229 = sand.u32 %s77, 1
        %s230 = smul.addr %s229, 16
        %s231 = scalar_lea.vmem [#allocation5], %s230
        // Predicated region
        $region33: #{tpu_custom_call.1} parent=27 // pred_check
          %p232 = pneg %p90
        $region34: #{tpu_custom_call.1} parent=27 // pred_check_branch
          %234 = sbr.rel (%p232) target = $region36
        $region35: #{tpu_custom_call.1} parent=27 // pred_region
          %235 = dma.done %s228, 256
        $region36: #{tpu_custom_call.1} parent=27 // pred_fallthru
          _
        %s236 = sand.u32 %s49, 1
        %s237 = scalar_lea.sflag [#allocation3], %s236
        %s238 = sand.u32 %s49, 1
        %s239 = smul.addr %s238, 128
        %s240 = scalar_lea.vmem [#allocation2], %s239
        %p241 = pneg %p62
        %p242 = pneg %p59
        %s243 = sand.u32 %s77, 1
        %s244 = scalar_lea.sflag [#allocation6], %s243
        %s245 = sand.u32 %s77, 1
        %s246 = smul.addr %s245, 16
        %s247 = scalar_lea.vmem [#allocation5], %s246
        %p248 = pneg %p90
        %p249 = pneg %p87
        %p250 = pneg %p118
        %p251 = pneg %p115
        %s252 = sand.u32 %s105, 1
        %s253 = scalar_lea.sflag [#allocation4], %s252
        %s254 = sand.u32 %s105, 1
        %s255 = smul.addr %s254, 16
        %s256 = scalar_lea.vmem [#allocation7], %s255
        %p257 = pneg %p146
        %p258 = pneg %p143
        %s259 = sand.u32 %s133, 1
        %s260 = scalar_lea.sflag [#allocation9], %s259
        %s261 = sand.u32 %s133, 1
        %s262 = smul.addr %s261, 8
        %s263 = scalar_lea.vmem [#allocation8], %s262
        %s264 = smul.u32 2, %s32
        %s265 = smul.u32 2, %s32
        %s266 = smul.u32 2, %s32
        %v267 = vld [vmem:[%s231] sm:$0xff]
        %v268 = vld [vmem:[%s231 + $0x8] sm:$0xff]
        %vm269 = vcmp.ne.s32.totalorder %v267, 4294967295
        %vm270 = vcmp.ne.s32.totalorder %v268, 4294967295
        %v271 = vld [vmem:[%s222] sm:$0xff]
        %v272 = vld [vmem:[%s222 + $0x8] sm:$0xff]
        %s273 = scalar_lea.vmem %s222, 16 [#allocation2]
        %v274 = vld [vmem:[%s273] sm:$0xff]
        %v275 = vld [vmem:[%s273 + $0x8] sm:$0xff]
        %v276 = vmax.f32 %v271, %v274
        %v277 = vmax.f32 %v272, %v275
        %s278 = scalar_lea.vmem %s222, 32 [#allocation2]
        %v279 = vld [vmem:[%s278] sm:$0xff]
        %v280 = vld [vmem:[%s278 + $0x8] sm:$0xff]
        %v281 = vmax.f32 %v276, %v279
        %v282 = vmax.f32 %v277, %v280
        %s283 = scalar_lea.vmem %s222, 48 [#allocation2]
        %v284 = vld [vmem:[%s283] sm:$0xff]
        %v285 = vld [vmem:[%s283 + $0x8] sm:$0xff]
        %v286 = vmax.f32 %v281, %v284
        %v287 = vmax.f32 %v282, %v285
        %s288 = scalar_lea.vmem %s222, 64 [#allocation2]
        %v289 = vld [vmem:[%s288] sm:$0xff]
        %v290 = vld [vmem:[%s288 + $0x8] sm:$0xff]
        %v291 = vmax.f32 %v286, %v289
        %v292 = vmax.f32 %v287, %v290
        %s293 = scalar_lea.vmem %s222, 80 [#allocation2]
        %v294 = vld [vmem:[%s293] sm:$0xff]
        %v295 = vld [vmem:[%s293 + $0x8] sm:$0xff]
        %v296 = vmax.f32 %v291, %v294
        %v297 = vmax.f32 %v292, %v295
        %s298 = scalar_lea.vmem %s222, 96 [#allocation2]
        %v299 = vld [vmem:[%s298] sm:$0xff]
        %v300 = vld [vmem:[%s298 + $0x8] sm:$0xff]
        %v301 = vmax.f32 %v296, %v299
        %v302 = vmax.f32 %v297, %v300
        %s303 = scalar_lea.vmem %s222, 112 [#allocation2]
        %v304 = vld [vmem:[%s303] sm:$0xff]
        %v305 = vld [vmem:[%s303 + $0x8] sm:$0xff]
        %v306 = vmax.f32 %v301, %v304
        %v307 = vmax.f32 %v302, %v305
        %v308 = vsub.f32 %v271, %v306
        %v309 = vsub.f32 %v272, %v307
        %v310 = vmul.f32 %v308, 1.442695
        %v311 = vpow.pop %v310
        %v312 = vmul.f32 %v309, 1.442695
        %v313 = vpow.pop %v312
        %v314 = vadd.f32 %v311, 0.0
        %v315 = vadd.f32 %v313, 0.0
        %vm316 = vcmp.eq.s32.totalorder %v267, 0
        %vm317 = vcmp.eq.s32.totalorder %v268, 0
        %v318 = vsel %vm316, %v271, 0.0
        %v319 = vsel %vm317, %v272, 0.0
        %v320 = vadd.f32 %v318, 0.0
        %v321 = vadd.f32 %v319, 0.0
        %v322 = vsub.f32 %v274, %v306
        %v323 = vsub.f32 %v275, %v307
        %v324 = vmul.f32 %v322, 1.442695
        %v325 = vpow.pop %v324
        %v326 = vmul.f32 %v323, 1.442695
        %v327 = vpow.pop %v326
        %v328 = vadd.f32 %v314, %v325
        %v329 = vadd.f32 %v315, %v327
        %vm330 = vcmp.eq.s32.totalorder %v267, 1
        %vm331 = vcmp.eq.s32.totalorder %v268, 1
        %v332 = vsel %vm330, %v274, 0.0
        %v333 = vsel %vm331, %v275, 0.0
        %v334 = vadd.f32 %v320, %v332
        %v335 = vadd.f32 %v321, %v333
        %v336 = vsub.f32 %v279, %v306
        %v337 = vsub.f32 %v280, %v307
        %v338 = vmul.f32 %v336, 1.442695
        %v339 = vpow.pop %v338
        %v340 = vmul.f32 %v337, 1.442695
        %v341 = vpow.pop %v340
        %v342 = vadd.f32 %v328, %v339
        %v343 = vadd.f32 %v329, %v341
        %vm344 = vcmp.eq.s32.totalorder %v267, 2
        %vm345 = vcmp.eq.s32.totalorder %v268, 2
        %v346 = vsel %vm344, %v279, 0.0
        %v347 = vsel %vm345, %v280, 0.0
        %v348 = vadd.f32 %v334, %v346
        %v349 = vadd.f32 %v335, %v347
        %v350 = vsub.f32 %v284, %v306
        %v351 = vsub.f32 %v285, %v307
        %v352 = vmul.f32 %v350, 1.442695
        %v353 = vpow.pop %v352
        %v354 = vmul.f32 %v351, 1.442695
        %v355 = vpow.pop %v354
        %v356 = vadd.f32 %v342, %v353
        %v357 = vadd.f32 %v343, %v355
        %vm358 = vcmp.eq.s32.totalorder %v267, 3
        %vm359 = vcmp.eq.s32.totalorder %v268, 3
        %v360 = vsel %vm358, %v284, 0.0
        %v361 = vsel %vm359, %v285, 0.0
        %v362 = vadd.f32 %v348, %v360
        %v363 = vadd.f32 %v349, %v361
        %v364 = vsub.f32 %v289, %v306
        %v365 = vsub.f32 %v290, %v307
        %v366 = vmul.f32 %v364, 1.442695
        %v367 = vpow.pop %v366
        %v368 = vmul.f32 %v365, 1.442695
        %v369 = vpow.pop %v368
        %v370 = vadd.f32 %v356, %v367
        %v371 = vadd.f32 %v357, %v369
        %vm372 = vcmp.eq.s32.totalorder %v267, 4
        %vm373 = vcmp.eq.s32.totalorder %v268, 4
        %v374 = vsel %vm372, %v289, 0.0
        %v375 = vsel %vm373, %v290, 0.0
        %v376 = vadd.f32 %v362, %v374
        %v377 = vadd.f32 %v363, %v375
        %v378 = vsub.f32 %v294, %v306
        %v379 = vsub.f32 %v295, %v307
        %v380 = vmul.f32 %v378, 1.442695
        %v381 = vpow.pop %v380
        %v382 = vmul.f32 %v379, 1.442695
        %v383 = vpow.pop %v382
        %v384 = vadd.f32 %v370, %v381
        %v385 = vadd.f32 %v371, %v383
        %vm386 = vcmp.eq.s32.totalorder %v267, 5
        %vm387 = vcmp.eq.s32.totalorder %v268, 5
        %v388 = vsel %vm386, %v294, 0.0
        %v389 = vsel %vm387, %v295, 0.0
        %v390 = vadd.f32 %v376, %v388
        %v391 = vadd.f32 %v377, %v389
        %v392 = vsub.f32 %v299, %v306
        %v393 = vsub.f32 %v300, %v307
        %v394 = vmul.f32 %v392, 1.442695
        %v395 = vpow.pop %v394
        %v396 = vmul.f32 %v393, 1.442695
        %v397 = vpow.pop %v396
        %v398 = vadd.f32 %v384, %v395
        %v399 = vadd.f32 %v385, %v397
        %vm400 = vcmp.eq.s32.totalorder %v267, 6
        %vm401 = vcmp.eq.s32.totalorder %v268, 6
        %v402 = vsel %vm400, %v299, 0.0
        %v403 = vsel %vm401, %v300, 0.0
        %v404 = vadd.f32 %v390, %v402
        %v405 = vadd.f32 %v391, %v403
        %v406 = vsub.f32 %v304, %v306
        %v407 = vsub.f32 %v305, %v307
        %v408 = vmul.f32 %v406, 1.442695
        %v409 = vpow.pop %v408
        %v410 = vmul.f32 %v407, 1.442695
        %v411 = vpow.pop %v410
        %v412 = vadd.f32 %v398, %v409
        %v413 = vadd.f32 %v399, %v411
        %vm414 = vcmp.eq.s32.totalorder %v267, 7
        %vm415 = vcmp.eq.s32.totalorder %v268, 7
        %v416 = vsel %vm414, %v304, 0.0
        %v417 = vsel %vm415, %v305, 0.0
        %v418 = vadd.f32 %v404, %v416
        %v419 = vadd.f32 %v405, %v417
        %v420 = vsub.f32 %v418, %v306
        %v421 = vsub.f32 %v419, %v307
        %v422 = vlog2.pop %v412
        %v423 = vmul.f32 %v422, 0.6931472
        %v424 = vlog2.pop %v413
        %v425 = vmul.f32 %v424, 0.6931472
        %v426 = vsub.f32 %v420, %v423
        %v427 = vsub.f32 %v421, %v425
        %v428 = vsel %vm269, %v426, 1.0
        %v429 = vsel %vm270, %v427, 1.0
        %vm430 = vcmask 130048
        %431 = vst.msk [vmem:[%s256] sm:$0xff] %vm430, %v428
        %432 = vst.msk [vmem:[%s256 + $0x8] sm:$0xff] %vm430, %v429
        %v433 = vmul.f32 %v428, 1.442695
        %v434 = vpow.pop %v433
        %v435 = vmul.f32 %v429, 1.442695
        %v436 = vpow.pop %v435
        %v437 = vlaneseq
        %v438 = vand.u32 %v437, 127
        %v439 = vlaneseq
        %v440 = vshrl.u32 %v439, 7
        %vm441 = vcmp.le.f32.partialorder %v434, 1.5046327e-36
        %vm442 = vcmp.le.f32.partialorder %v436, 1.5046327e-36
        %v443 = vsel %vm441, 1, 0
        %v444 = vsel %vm442, 1, 0
        %v445 = vcvt.s32.f32 %v443
        %v446 = vcvt.s32.f32 %v444
        %v447 = vsel %vm430, %v445, 0.0
        %v448 = vsel %vm430, %v446, 0.0
        %v449 = vadd.f32 %v447, %v448
        %450 = vadd.xlane.f32.xlu0 %v449
        %v451 = vpop.xlane.xlu0 %450
        %v452 = vrot.slane %v451, 4
        %v453 = vadd.f32 %v451, %v452
        %v454 = vrot.slane %v453, 2
        %v455 = vadd.f32 %v453, %v454
        %v456 = vrot.slane %v455, 1
        %v457 = vadd.f32 %v455, %v456
        %s458 = vtos %v457
        %vm459 = vcmp.eq.s32.totalorder %v438, 0
        %vm460 = vcmp.eq.s32.totalorder %v440, 0
        %vm461 = vmand %vm459, %vm460
        %v462 = vstv %s458
        %v463 = vsel %vm461, %v462, 0.0
        %vm464 = vcmp.le.f32.partialorder %v434, 3.8518597e-34
        %vm465 = vcmp.le.f32.partialorder %v436, 3.8518597e-34
        %v466 = vsel %vm464, 1, 0
        %v467 = vsel %vm465, 1, 0
        %v468 = vcvt.s32.f32 %v466
        %v469 = vcvt.s32.f32 %v467
        %v470 = vsel %vm430, %v468, 0.0
        %v471 = vsel %vm430, %v469, 0.0
        %v472 = vadd.f32 %v470, %v471
        %473 = vadd.xlane.f32.xlu0 %v472
        %v474 = vpop.xlane.xlu0 %473
        %v475 = vrot.slane %v474, 4
        %v476 = vadd.f32 %v474, %v475
        %v477 = vrot.slane %v476, 2
        %v478 = vadd.f32 %v476, %v477
        %v479 = vrot.slane %v478, 1
        %v480 = vadd.f32 %v478, %v479
        %s481 = vtos %v480
        %vm482 = vcmp.eq.s32.totalorder %v438, 1
        %vm483 = vmand %vm482, %vm460
        %v484 = vstv %s481
        %v485 = vsel %vm483, %v484, %v463
        %vm486 = vcmp.le.f32.partialorder %v434, 9.860761e-32
        %vm487 = vcmp.le.f32.partialorder %v436, 9.860761e-32
        %v488 = vsel %vm486, 1, 0
        %v489 = vsel %vm487, 1, 0
        %v490 = vcvt.s32.f32 %v488
        %v491 = vcvt.s32.f32 %v489
        %v492 = vsel %vm430, %v490, 0.0
        %v493 = vsel %vm430, %v491, 0.0
        %v494 = vadd.f32 %v492, %v493
        %495 = vadd.xlane.f32.xlu0 %v494
        %v496 = vpop.xlane.xlu0 %495
        %v497 = vrot.slane %v496, 4
        %v498 = vadd.f32 %v496, %v497
        %v499 = vrot.slane %v498, 2
        %v500 = vadd.f32 %v498, %v499
        %v501 = vrot.slane %v500, 1
        %v502 = vadd.f32 %v500, %v501
        %s503 = vtos %v502
        %vm504 = vcmp.eq.s32.totalorder %v438, 2
        %vm505 = vmand %vm504, %vm460
        %v506 = vstv %s503
        %v507 = vsel %vm505, %v506, %v485
        %vm508 = vcmp.le.f32.partialorder %v434, 2.5243547e-29
        %vm509 = vcmp.le.f32.partialorder %v436, 2.5243547e-29
        %v510 = vsel %vm508, 1, 0
        %v511 = vsel %vm509, 1, 0
        %v512 = vcvt.s32.f32 %v510
        %v513 = vcvt.s32.f32 %v511
        %v514 = vsel %vm430, %v512, 0.0
        %v515 = vsel %vm430, %v513, 0.0
        %v516 = vadd.f32 %v514, %v515
        %517 = vadd.xlane.f32.xlu0 %v516
        %v518 = vpop.xlane.xlu0 %517
        %v519 = vrot.slane %v518, 4
        %v520 = vadd.f32 %v518, %v519
        %v521 = vrot.slane %v520, 2
        %v522 = vadd.f32 %v520, %v521
        %v523 = vrot.slane %v522, 1
        %v524 = vadd.f32 %v522, %v523
        %s525 = vtos %v524
        %vm526 = vcmp.eq.s32.totalorder %v438, 3
        %vm527 = vmand %vm526, %vm460
        %v528 = vstv %s525
        %v529 = vsel %vm527, %v528, %v507
        %vm530 = vcmp.le.f32.partialorder %v434, 6.462348e-27
        %vm531 = vcmp.le.f32.partialorder %v436, 6.462348e-27
        %v532 = vsel %vm530, 1, 0
        %v533 = vsel %vm531, 1, 0
        %v534 = vcvt.s32.f32 %v532
        %v535 = vcvt.s32.f32 %v533
        %v536 = vsel %vm430, %v534, 0.0
        %v537 = vsel %vm430, %v535, 0.0
        %v538 = vadd.f32 %v536, %v537
        %539 = vadd.xlane.f32.xlu0 %v538
        %v540 = vpop.xlane.xlu0 %539
        %v541 = vrot.slane %v540, 4
        %v542 = vadd.f32 %v540, %v541
        %v543 = vrot.slane %v542, 2
        %v544 = vadd.f32 %v542, %v543
        %v545 = vrot.slane %v544, 1
        %v546 = vadd.f32 %v544, %v545
        %s547 = vtos %v546
        %vm548 = vcmp.eq.s32.totalorder %v438, 4
        %vm549 = vmand %vm548, %vm460
        %v550 = vstv %s547
        %v551 = vsel %vm549, %v550, %v529
        %vm552 = vcmp.le.f32.partialorder %v434, 1.6543611e-24
        %vm553 = vcmp.le.f32.partialorder %v436, 1.6543611e-24
        %v554 = vsel %vm552, 1, 0
        %v555 = vsel %vm553, 1, 0
        %v556 = vcvt.s32.f32 %v554
        %v557 = vcvt.s32.f32 %v555
        %v558 = vsel %vm430, %v556, 0.0
        %v559 = vsel %vm430, %v557, 0.0
        %v560 = vadd.f32 %v558, %v559
        %561 = vadd.xlane.f32.xlu0 %v560
        %v562 = vpop.xlane.xlu0 %561
        %v563 = vrot.slane %v562, 4
        %v564 = vadd.f32 %v562, %v563
        %v565 = vrot.slane %v564, 2
        %v566 = vadd.f32 %v564, %v565
        %v567 = vrot.slane %v566, 1
        %v568 = vadd.f32 %v566, %v567
        %s569 = vtos %v568
        %vm570 = vcmp.eq.s32.totalorder %v438, 5
        %vm571 = vmand %vm570, %vm460
        %v572 = vstv %s569
        %v573 = vsel %vm571, %v572, %v551
        %vm574 = vcmp.le.f32.partialorder %v434, 4.2351645e-22
        %vm575 = vcmp.le.f32.partialorder %v436, 4.2351645e-22
        %v576 = vsel %vm574, 1, 0
        %v577 = vsel %vm575, 1, 0
        %v578 = vcvt.s32.f32 %v576
        %v579 = vcvt.s32.f32 %v577
        %v580 = vsel %vm430, %v578, 0.0
        %v581 = vsel %vm430, %v579, 0.0
        %v582 = vadd.f32 %v580, %v581
        %583 = vadd.xlane.f32.xlu0 %v582
        %v584 = vpop.xlane.xlu0 %583
        %v585 = vrot.slane %v584, 4
        %v586 = vadd.f32 %v584, %v585
        %v587 = vrot.slane %v586, 2
        %v588 = vadd.f32 %v586, %v587
        %v589 = vrot.slane %v588, 1
        %v590 = vadd.f32 %v588, %v589
        %s591 = vtos %v590
        %vm592 = vcmp.eq.s32.totalorder %v438, 6
        %vm593 = vmand %vm592, %vm460
        %v594 = vstv %s591
        %v595 = vsel %vm593, %v594, %v573
        %vm596 = vcmp.le.f32.partialorder %v434, 1.0842021e-19
        %vm597 = vcmp.le.f32.partialorder %v436, 1.0842021e-19
        %v598 = vsel %vm596, 1, 0
        %v599 = vsel %vm597, 1, 0
        %v600 = vcvt.s32.f32 %v598
        %v601 = vcvt.s32.f32 %v599
        %v602 = vsel %vm430, %v600, 0.0
        %v603 = vsel %vm430, %v601, 0.0
        %v604 = vadd.f32 %v602, %v603
        %605 = vadd.xlane.f32.xlu0 %v604
        %v606 = vpop.xlane.xlu0 %605
        %v607 = vrot.slane %v606, 4
        %v608 = vadd.f32 %v606, %v607
        %v609 = vrot.slane %v608, 2
        %v610 = vadd.f32 %v608, %v609
        %v611 = vrot.slane %v610, 1
        %v612 = vadd.f32 %v610, %v611
        %s613 = vtos %v612
        %vm614 = vcmp.eq.s32.totalorder %v438, 7
        %vm615 = vmand %vm614, %vm460
        %v616 = vstv %s613
        %v617 = vsel %vm615, %v616, %v595
        %vm618 = vcmp.le.f32.partialorder %v434, 2.7755574e-17
        %vm619 = vcmp.le.f32.partialorder %v436, 2.7755574e-17
        %v620 = vsel %vm618, 1, 0
        %v621 = vsel %vm619, 1, 0
        %v622 = vcvt.s32.f32 %v620
        %v623 = vcvt.s32.f32 %v621
        %v624 = vsel %vm430, %v622, 0.0
        %v625 = vsel %vm430, %v623, 0.0
        %v626 = vadd.f32 %v624, %v625
        %627 = vadd.xlane.f32.xlu0 %v626
        %v628 = vpop.xlane.xlu0 %627
        %v629 = vrot.slane %v628, 4
        %v630 = vadd.f32 %v628, %v629
        %v631 = vrot.slane %v630, 2
        %v632 = vadd.f32 %v630, %v631
        %v633 = vrot.slane %v632, 1
        %v634 = vadd.f32 %v632, %v633
        %s635 = vtos %v634
        %vm636 = vcmp.eq.s32.totalorder %v438, 8
        %vm637 = vmand %vm636, %vm460
        %v638 = vstv %s635
        %v639 = vsel %vm637, %v638, %v617
        %vm640 = vcmp.le.f32.partialorder %v434, 7.105427e-15
        %vm641 = vcmp.le.f32.partialorder %v436, 7.105427e-15
        %v642 = vsel %vm640, 1, 0
        %v643 = vsel %vm641, 1, 0
        %v644 = vcvt.s32.f32 %v642
        %v645 = vcvt.s32.f32 %v643
        %v646 = vsel %vm430, %v644, 0.0
        %v647 = vsel %vm430, %v645, 0.0
        %v648 = vadd.f32 %v646, %v647
        %649 = vadd.xlane.f32.xlu0 %v648
        %v650 = vpop.xlane.xlu0 %649
        %v651 = vrot.slane %v650, 4
        %v652 = vadd.f32 %v650, %v651
        %v653 = vrot.slane %v652, 2
        %v654 = vadd.f32 %v652, %v653
        %v655 = vrot.slane %v654, 1
        %v656 = vadd.f32 %v654, %v655
        %s657 = vtos %v656
        %vm658 = vcmp.eq.s32.totalorder %v438, 9
        %vm659 = vmand %vm658, %vm460
        %v660 = vstv %s657
        %v661 = vsel %vm659, %v660, %v639
        %vm662 = vcmp.le.f32.partialorder %v434, 1.8189893e-12
        %vm663 = vcmp.le.f32.partialorder %v436, 1.8189893e-12
        %v664 = vsel %vm662, 1, 0
        %v665 = vsel %vm663, 1, 0
        %v666 = vcvt.s32.f32 %v664
        %v667 = vcvt.s32.f32 %v665
        %v668 = vsel %vm430, %v666, 0.0
        %v669 = vsel %vm430, %v667, 0.0
        %v670 = vadd.f32 %v668, %v669
        %671 = vadd.xlane.f32.xlu0 %v670
        %v672 = vpop.xlane.xlu0 %671
        %v673 = vrot.slane %v672, 4
        %v674 = vadd.f32 %v672, %v673
        %v675 = vrot.slane %v674, 2
        %v676 = vadd.f32 %v674, %v675
        %v677 = vrot.slane %v676, 1
        %v678 = vadd.f32 %v676, %v677
        %s679 = vtos %v678
        %vm680 = vcmp.eq.s32.totalorder %v438, 10
        %vm681 = vmand %vm680, %vm460
        %v682 = vstv %s679
        %v683 = vsel %vm681, %v682, %v661
        %vm684 = vcmp.le.f32.partialorder %v434, 4.6566126e-10
        %vm685 = vcmp.le.f32.partialorder %v436, 4.6566126e-10
        %v686 = vsel %vm684, 1, 0
        %v687 = vsel %vm685, 1, 0
        %v688 = vcvt.s32.f32 %v686
        %v689 = vcvt.s32.f32 %v687
        %v690 = vsel %vm430, %v688, 0.0
        %v691 = vsel %vm430, %v689, 0.0
        %v692 = vadd.f32 %v690, %v691
        %693 = vadd.xlane.f32.xlu0 %v692
        %v694 = vpop.xlane.xlu0 %693
        %v695 = vrot.slane %v694, 4
        %v696 = vadd.f32 %v694, %v695
        %v697 = vrot.slane %v696, 2
        %v698 = vadd.f32 %v696, %v697
        %v699 = vrot.slane %v698, 1
        %v700 = vadd.f32 %v698, %v699
        %s701 = vtos %v700
        %vm702 = vcmp.eq.s32.totalorder %v438, 11
        %vm703 = vmand %vm702, %vm460
        %v704 = vstv %s701
        %v705 = vsel %vm703, %v704, %v683
        %vm706 = vcmp.le.f32.partialorder %v434, 1.1920928e-07
        %vm707 = vcmp.le.f32.partialorder %v436, 1.1920928e-07
        %v708 = vsel %vm706, 1, 0
        %v709 = vsel %vm707, 1, 0
        %v710 = vcvt.s32.f32 %v708
        %v711 = vcvt.s32.f32 %v709
        %v712 = vsel %vm430, %v710, 0.0
        %v713 = vsel %vm430, %v711, 0.0
        %v714 = vadd.f32 %v712, %v713
        %715 = vadd.xlane.f32.xlu0 %v714
        %v716 = vpop.xlane.xlu0 %715
        %v717 = vrot.slane %v716, 4
        %v718 = vadd.f32 %v716, %v717
        %v719 = vrot.slane %v718, 2
        %v720 = vadd.f32 %v718, %v719
        %v721 = vrot.slane %v720, 1
        %v722 = vadd.f32 %v720, %v721
        %s723 = vtos %v722
        %vm724 = vcmp.eq.s32.totalorder %v438, 12
        %vm725 = vmand %vm724, %vm460
        %v726 = vstv %s723
        %v727 = vsel %vm725, %v726, %v705
        %vm728 = vcmp.le.f32.partialorder %v434, 3.0517576e-05
        %vm729 = vcmp.le.f32.partialorder %v436, 3.0517576e-05
        %v730 = vsel %vm728, 1, 0
        %v731 = vsel %vm729, 1, 0
        %v732 = vcvt.s32.f32 %v730
        %v733 = vcvt.s32.f32 %v731
        %v734 = vsel %vm430, %v732, 0.0
        %v735 = vsel %vm430, %v733, 0.0
        %v736 = vadd.f32 %v734, %v735
        %737 = vadd.xlane.f32.xlu0 %v736
        %v738 = vpop.xlane.xlu0 %737
        %v739 = vrot.slane %v738, 4
        %v740 = vadd.f32 %v738, %v739
        %v741 = vrot.slane %v740, 2
        %v742 = vadd.f32 %v740, %v741
        %v743 = vrot.slane %v742, 1
        %v744 = vadd.f32 %v742, %v743
        %s745 = vtos %v744
        %vm746 = vcmp.eq.s32.totalorder %v438, 13
        %vm747 = vmand %vm746, %vm460
        %v748 = vstv %s745
        %v749 = vsel %vm747, %v748, %v727
        %vm750 = vcmp.le.f32.partialorder %v434, 0.0078124995
        %vm751 = vcmp.le.f32.partialorder %v436, 0.0078124995
        %v752 = vsel %vm750, 1, 0
        %v753 = vsel %vm751, 1, 0
        %v754 = vcvt.s32.f32 %v752
        %v755 = vcvt.s32.f32 %v753
        %v756 = vsel %vm430, %v754, 0.0
        %v757 = vsel %vm430, %v755, 0.0
        %v758 = vadd.f32 %v756, %v757
        %759 = vadd.xlane.f32.xlu0 %v758
        %v760 = vpop.xlane.xlu0 %759
        %v761 = vrot.slane %v760, 4
        %v762 = vadd.f32 %v760, %v761
        %v763 = vrot.slane %v762, 2
        %v764 = vadd.f32 %v762, %v763
        %v765 = vrot.slane %v764, 1
        %v766 = vadd.f32 %v764, %v765
        %s767 = vtos %v766
        %vm768 = vcmp.eq.s32.totalorder %v438, 14
        %vm769 = vmand %vm768, %vm460
        %v770 = vstv %s767
        %v771 = vsel %vm769, %v770, %v749
        %vm772 = vcmp.le.f32.partialorder %v434, 1.9999999
        %vm773 = vcmp.le.f32.partialorder %v436, 1.9999999
        %v774 = vsel %vm772, 1, 0
        %v775 = vsel %vm773, 1, 0
        %v776 = vcvt.s32.f32 %v774
        %v777 = vcvt.s32.f32 %v775
        %v778 = vsel %vm430, %v776, 0.0
        %v779 = vsel %vm430, %v777, 0.0
        %v780 = vadd.f32 %v778, %v779
        %781 = vadd.xlane.f32.xlu0 %v780
        %v782 = vpop.xlane.xlu0 %781
        %v783 = vrot.slane %v782, 4
        %v784 = vadd.f32 %v782, %v783
        %v785 = vrot.slane %v784, 2
        %v786 = vadd.f32 %v784, %v785
        %v787 = vrot.slane %v786, 1
        %v788 = vadd.f32 %v786, %v787
        %s789 = vtos %v788
        %vm790 = vcmp.eq.s32.totalorder %v438, 15
        %vm791 = vmand %vm790, %vm460
        %v792 = vstv %s789
        %v793 = vsel %vm791, %v792, %v771
        %794 = vst [vmem:[%s263] sm:$0xff] %v793
        %s795 = sand.u32 %s105, 1
        %s796 = scalar_lea.sflag [#allocation4], %s795
        %s797 = sand.u32 %s105, 1
        %s798 = smul.addr %s797, 16
        %s799 = scalar_lea.vmem [#allocation7], %s798
        %s800 = sand.u32 %s133, 1
        %s801 = scalar_lea.sflag [#allocation9], %s800
        %s802 = sand.u32 %s133, 1
        %s803 = smul.addr %s802, 8
        %s804 = scalar_lea.vmem [#allocation8], %s803
        // Predicated region
        $region37: #{tpu_custom_call.1} parent=27 // pred_check
          %p805 = pneg %p115
        $region38: #{tpu_custom_call.1} parent=27 // pred_check_branch
          %807 = sbr.rel (%p805) target = $region40
        $region39: #{tpu_custom_call.1} parent=27 // pred_region
          %s808 = smul.u32 2, %s32
          %s810 = ssub.s32 256, 256
          %811 = vsyncadd %s796, %s810
          %s812 = smul.addr %s31, 2
          %s813 = sadd.s32 %s808, %s812
          %s814 = smul.addr %s813, 128
          %s815 = scalar_lea.hbm %s2, %s814
          %s816 = sshll.u32 %s799, 4
          %s817 = int_to_ptr.vmem [resolvable:$true] %s816
          %822 = dma.vmem_to_hbm [thread:$0]  %s817, 256, %s815, %s796, 128, 128, 8
        $region40: #{tpu_custom_call.1} parent=27 // pred_fallthru
          _
        // Predicated region
        $region41: #{tpu_custom_call.1} parent=27 // pred_check
          %p823 = pneg %p143
        $region42: #{tpu_custom_call.1} parent=27 // pred_check_branch
          %825 = sbr.rel (%p823) target = $region44
        $region43: #{tpu_custom_call.1} parent=27 // pred_region
          %s827 = ssub.s32 128, 128
          %828 = vsyncadd %s801, %s827
          %s829 = sadd.s32 %s32, %s31
          %s830 = smul.addr %s829, 128
          %s831 = scalar_lea.hbm %s3, %s830
          %s833 = sshll.u32 %s804, 4
          %s834 = int_to_ptr.vmem [resolvable:$true] %s833
          %836 = dma.vmem_to_hbm [thread:$0]  %s834, 128, %s831, %s801
        $region44: #{tpu_custom_call.1} parent=27 // pred_fallthru
          _
      $region28: #{tpu_custom_call.1} parent=5 // pred_fallthru
        _
      %p837 = scmp.le.s32.totalorder 2, %s22
      // Predicated region
      $region45: #{tpu_custom_call.1} parent=5 // pred_check
        %p838 = pneg %p837
      $region46: #{tpu_custom_call.1} parent=5 // pred_check_branch
        %840 = sbr.rel (%p838) target = $region48
      $region47: #{tpu_custom_call.1} parent=5 // pred_region
        %s841 = ssub.s32 %s22, 2
        // Predicated region
        $region49: #{tpu_custom_call.1} parent=47 // pred_check
          %p842 = pneg %p121
        $region50: #{tpu_custom_call.1} parent=47 // pred_check_branch
          %844 = sbr.rel (%p842) target = $region52
        $region51: #{tpu_custom_call.1} parent=47 // pred_region
          %s845 = sand.u32 %s106, 1
          %s846 = scalar_lea.sflag [#allocation4], %s845
          %s847 = sand.u32 %s106, 1
          %s848 = smul.addr %s847, 16
          %s849 = scalar_lea.vmem [#allocation7], %s848
          %850 = dma.done %s846, 256
        $region52: #{tpu_custom_call.1} parent=47 // pred_fallthru
          _
        // Predicated region
        $region53: #{tpu_custom_call.1} parent=47 // pred_check
          %p851 = pneg %p149
        $region54: #{tpu_custom_call.1} parent=47 // pred_check_branch
          %853 = sbr.rel (%p851) target = $region56
        $region55: #{tpu_custom_call.1} parent=47 // pred_region
          %s854 = sand.u32 %s134, 1
          %s855 = scalar_lea.sflag [#allocation9], %s854
          %s856 = sand.u32 %s134, 1
          %s857 = smul.addr %s856, 8
          %s858 = scalar_lea.vmem [#allocation8], %s857
          %859 = dma.done %s855, 128
        $region56: #{tpu_custom_call.1} parent=47 // pred_fallthru
          _
      $region48: #{tpu_custom_call.1} parent=5 // pred_fallthru
        _
    $region6: #{tpu_custom_call.1} parent=1 // loop_footer
      %s26 = sadd.s32 1, %s22
    $region7: #{tpu_custom_call.1} parent=1 // loop_footer_branch
      %21 = sbr.rel target = $region3
    $region8: #{tpu_custom_call.1} parent=1 // loop_exit
      _
    %860 = vsyncpa [#allocation3], 1
    %s861 = scalar_lea.sflag [#allocation3], 1
    %862 = vsyncpa %s861, 1
    %863 = vsyncpa [#allocation6], 1
    %s864 = scalar_lea.sflag [#allocation6], 1
    %865 = vsyncpa %s864, 1
    %866 = vsyncpa [#allocation4], 1
    %s867 = scalar_lea.sflag [#allocation4], 1
    %868 = vsyncpa %s867, 1
    %869 = vsyncpa [#allocation9], 1
    %s870 = scalar_lea.sflag [#allocation9], 1
    %871 = vsyncpa %s870, 1

</llo_original>
